<compile_context>
chip_gen: v6e
topology: v6e:2x2x1
jax: 0.10.0
libtpu: 0.0.40
codegen_flags: <defaults>
</compile_context>

<pallas_src>
import functools

import jax
import jax.numpy as jnp
from jax import lax
from jax.experimental import pallas as pl
from jax.experimental.pallas import tpu as pltpu

INPUT_SIZE = 28
HIDDEN = 64
OUT = 10
SUBLANE = 8


def lstm_kernel(x_ref, wih_ref, whh_ref, b_ref, wout_ref, bout_ref,
                out_ref, xp_ref, *, seq_len, batch_pad, batch, hidden):
    """Whole LSTM forward + final Linear in one kernel invocation.

    x_ref:    (T*Bp, I)   time-major, batch padded to Bp=8, flattened
    wih_ref:  (I, 4H)     W_ih^T
    whh_ref:  (H, 4H)     W_hh^T
    b_ref:    (1, 4H)     b_ih + b_hh
    wout_ref: (H, OUT)    W_out^T
    bout_ref: (1, OUT)
    out_ref:  (B, OUT)    only the real batch rows
    xp_ref:   (T*Bp, 4H)  VMEM scratch for the hoisted input projection
    """
    T, Bp, B, H = seq_len, batch_pad, batch, hidden

    # ---- Hoisted input projection: one MXU matmul for all timesteps. ----
    xp_ref[...] = (jnp.dot(x_ref[...], wih_ref[...],
                           preferred_element_type=jnp.float32)
                   + b_ref[...])                              # (T*Bp, 4H)

    # Pre-scale vector: 2.0 on the g columns so a single full-slab sigmoid
    # yields sigmoid(i), sigmoid(f), sigmoid(2g), sigmoid(o); then
    # tanh(g) = 2*sigmoid(2g) - 1 is a cheap VPU fix-up (1 EUP push/step for
    # all four gates instead of 3).  PyTorch gate order: i, f, g, o.
    col = lax.broadcasted_iota(jnp.int32, (1, 4 * H), 1)
    gate_scale = jnp.where((col >= 2 * H) & (col < 3 * H),
                           jnp.float32(2.0), jnp.float32(1.0))

    h0 = jnp.zeros((Bp, H), jnp.float32)
    c0 = jnp.zeros((Bp, H), jnp.float32)

    def step(t, carry):
        h, c = carry
        base = pl.multiple_of(t * Bp, SUBLANE)
        gates = xp_ref[pl.ds(base, Bp), :] + jnp.dot(
            h, whh_ref[...], preferred_element_type=jnp.float32)   # (Bp, 4H)

        s = jax.nn.sigmoid(gates * gate_scale)          # one full-slab EUP push
        i_g = s[:, 0 * H:1 * H]
        f_g = s[:, 1 * H:2 * H]
        g_g = 2.0 * s[:, 2 * H:3 * H] - 1.0             # tanh(g)
        o_g = s[:, 3 * H:4 * H]

        c = f_g * c + i_g * g_g
        tanh_c = 2.0 * jax.nn.sigmoid(2.0 * c) - 1.0    # second (half-vreg) push
        h = o_g * tanh_c
        return h, c

    # Fully unrolled (T small, static) with bounded live ranges.
    h, _ = lax.fori_loop(0, T, step, (h0, c0), unroll=True)

    # ---- Final Linear(64 -> 10); store only the real batch rows. ----
    full = (jnp.dot(h, wout_ref[...], preferred_element_type=jnp.float32)
            + bout_ref[...])                                  # (Bp, OUT)
    out_ref[...] = full[:B].astype(out_ref.dtype)


def prepare_params(w_ih, w_hh, b_ih, b_hh, w_out, b_out):
    """One-time weight preprocessing, hoisted out of the per-call jit path."""
    H = HIDDEN
    return dict(
        wih_t=jnp.asarray(w_ih.T, jnp.float32),               # (I, 4H)
        whh_t=jnp.asarray(w_hh.T, jnp.float32),               # (H, 4H)
        bias=jnp.asarray((b_ih + b_hh).reshape(1, 4 * H), jnp.float32),
        wout_t=jnp.asarray(w_out.T, jnp.float32),              # (H, OUT)
        bout=jnp.asarray(b_out.reshape(1, OUT), jnp.float32),  # (1, OUT)
    )


@jax.jit
def rnn_forward(x, wih_t, whh_t, bias, wout_t, bout):
    """x: (B, T, INPUT_SIZE) float32 -> (B, 10) float32."""
    B, T, I = x.shape
    H = HIDDEN
    Bp = ((B + SUBLANE - 1) // SUBLANE) * SUBLANE   # pad batch to sublane tile

    # Tiny pad + time-major flatten; XLA fuses pad/transpose/reshape.
    x_p = jnp.pad(x, ((0, Bp - B), (0, 0), (0, 0)))           # (Bp, T, I)
    x_tm = jnp.transpose(x_p, (1, 0, 2)).reshape(T * Bp, I)   # (T*Bp, I)

    kernel = functools.partial(lstm_kernel, seq_len=T, batch_pad=Bp,
                               batch=B, hidden=H)

    vmem = pl.BlockSpec(memory_space=pltpu.MemorySpace.VMEM)
    # Entire working set (< 0.3 MiB) fits in VMEM: grid-less single
    # invocation, no pipelining needed.
    return pl.pallas_call(
        kernel,
        out_shape=jax.ShapeDtypeStruct((B, OUT), jnp.float32),
        in_specs=[vmem] * 6,
        out_specs=vmem,
        scratch_shapes=[pltpu.VMEM((T * Bp, 4 * H), jnp.float32)],
    )(x_tm, wih_t, whh_t, bias, wout_t, bout)


def rnn_forward_ref(x, w_ih, w_hh, b_ih, b_hh, w_out, b_out):
    """Pure-JAX reference (PyTorch LSTM gate order i, f, g, o)."""
    B, T, I = x.shape
    H = HIDDEN

    def step(carry, x_t):
        h, c = carry
        gates = x_t @ w_ih.T + h @ w_hh.T + b_ih + b_hh
        i = jax.nn.sigmoid(gates[:, 0 * H:1 * H])
        f = jax.nn.sigmoid(gates[:, 1 * H:2 * H])
        g = jnp.tanh(gates[:, 2 * H:3 * H])
        o = jax.nn.sigmoid(gates[:, 3 * H:4 * H])
        c = f * c + i * g
        h = o * jnp.tanh(c)
        return (h, c), h

    h0 = jnp.zeros((B, H), jnp.float32)
    c0 = jnp.zeros((B, H), jnp.float32)
    (h_T, _), _ = jax.lax.scan(step, (h0, c0), jnp.transpose(x, (1, 0, 2)))
    return h_T @ w_out.T + b_out


if __name__ == "__main__":
    key = jax.random.PRNGKey(0)
    B, T, I, H = 2, 8, INPUT_SIZE, HIDDEN

    keys = jax.random.split(key, 7)
    scale = 1.0 / jnp.sqrt(H)
    x = jax.random.normal(keys[0], (B, T, I), jnp.float32)
    w_ih = jax.random.uniform(keys[1], (4 * H, I), jnp.float32, -scale, scale)
    w_hh = jax.random.uniform(keys[2], (4 * H, H), jnp.float32, -scale, scale)
    b_ih = jax.random.uniform(keys[3], (4 * H,), jnp.float32, -scale, scale)
    b_hh = jax.random.uniform(keys[4], (4 * H,), jnp.float32, -scale, scale)
    w_out = jax.random.uniform(keys[5], (OUT, H), jnp.float32, -scale, scale)
    b_out = jax.random.uniform(keys[6], (OUT,), jnp.float32, -scale, scale)

    # Weight prep done once, outside the jitted per-call path.
    params = prepare_params(w_ih, w_hh, b_ih, b_hh, w_out, b_out)

    out = rnn_forward(x, params["wih_t"], params["whh_t"], params["bias"],
                      params["wout_t"], params["bout"])
    out = jax.block_until_ready(out)

    ref = rnn_forward_ref(x, w_ih, w_hh, b_ih, b_hh, w_out, b_out)
    assert out.shape == (B, OUT), out.shape
    assert jnp.allclose(out, ref, atol=1e-4, rtol=1e-4), (
        f"max abs err {jnp.max(jnp.abs(out - ref))}")

    print("KERNEL_OK")
</pallas_src>

<mosaic_0001>
module attributes {stable_mosaic.version = 11 : i64} {
  func.func @lstm_kernel(%arg0: memref<64x28xf32, #tpu.memory_space<vmem>>, %arg1: memref<28x256xf32, #tpu.memory_space<vmem>>, %arg2: memref<64x256xf32, #tpu.memory_space<vmem>>, %arg3: memref<1x256xf32, #tpu.memory_space<vmem>>, %arg4: memref<64x10xf32, #tpu.memory_space<vmem>>, %arg5: memref<1x10xf32, #tpu.memory_space<vmem>>, %arg6: memref<2x10xf32, #tpu.memory_space<vmem>>, %arg7: memref<64x256xf32, #tpu.memory_space<vmem>>) attributes {dimension_semantics = [], scalar_prefetch = 0 : i64, scratch_operands = 1 : i64, tpu.core_type = #tpu.core_type<tc>} {
    %c0 = arith.constant 0 : index
    %c0_0 = arith.constant 0 : index
    %0 = vector.load %arg0[%c0, %c0_0] : memref<64x28xf32, #tpu.memory_space<vmem>>, vector<64x28xf32>
    %c0_1 = arith.constant 0 : index
    %c0_2 = arith.constant 0 : index
    %1 = vector.load %arg1[%c0_1, %c0_2] : memref<28x256xf32, #tpu.memory_space<vmem>>, vector<28x256xf32>
    %cst = arith.constant dense<0.000000e+00> : vector<64x256xf32>
    %2 = tpu.matmul %0, %1, %cst {dimension_numbers = #tpu.dot_dimension_numbers<[1], [0], [0], [1], [0, 0, 1, 1], [], []>} : vector<64x28xf32>, vector<28x256xf32>, vector<64x256xf32> -> vector<64x256xf32>
    %c0_3 = arith.constant 0 : index
    %c0_4 = arith.constant 0 : index
    %3 = vector.load %arg3[%c0_3, %c0_4] : memref<1x256xf32, #tpu.memory_space<vmem>>, vector<1x256xf32>
    %4 = vector.broadcast %3 : vector<1x256xf32> to vector<64x256xf32>
    %5 = arith.addf %2, %4 : vector<64x256xf32>
    %c0_5 = arith.constant 0 : index
    %c0_6 = arith.constant 0 : index
    %6 = vector.load %arg7[%c0_5, %c0_6] : memref<64x256xf32, #tpu.memory_space<vmem>>, vector<64x256xf32>
    tpu.vector_store %arg7[%c0_5, %c0_6], %5 {strides = array<i32>} : memref<64x256xf32, #tpu.memory_space<vmem>>, vector<64x256xf32>,
    %7 = tpu.iota {dimensions = array<i32: 1>} : vector<1x256xi32>
    %c128_i32 = arith.constant 128 : i32
    %8 = vector.broadcast %c128_i32 : i32 to vector<1x256xi32>
    %9 = arith.cmpi sge, %7, %8 : vector<1x256xi32>
    %c192_i32 = arith.constant 192 : i32
    %10 = vector.broadcast %c192_i32 : i32 to vector<1x256xi32>
    %11 = arith.cmpi slt, %7, %10 : vector<1x256xi32>
    %12 = arith.andi %9, %11 : vector<1x256xi1>
    %cst_7 = arith.constant 2.000000e+00 : f32
    %cst_8 = arith.constant 1.000000e+00 : f32
    %13 = vector.broadcast %cst_7 : f32 to vector<1x256xf32>
    %14 = vector.broadcast %cst_8 : f32 to vector<1x256xf32>
    %15 = arith.select %12, %13, %14 : vector<1x256xi1>, vector<1x256xf32>
    %cst_9 = arith.constant 0.000000e+00 : f32
    %16 = vector.broadcast %cst_9 : f32 to vector<8x64xf32>
    %cst_10 = arith.constant 0.000000e+00 : f32
    %17 = vector.broadcast %cst_10 : f32 to vector<8x64xf32>
    %c0_i32 = arith.constant 0 : i32
    %c8_i32 = arith.constant 8 : i32
    %18 = arith.muli %c0_i32, %c8_i32 : i32
    %19 = tpu.assume_multiple %18, 8 : i32
    %20 = arith.index_cast %19 : i32 to index
    %c0_11 = arith.constant 0 : index
    %21 = vector.load %arg7[%20, %c0_11] : memref<64x256xf32, #tpu.memory_space<vmem>>, vector<8x256xf32>
    %c0_12 = arith.constant 0 : index
    %c0_13 = arith.constant 0 : index
    %22 = vector.load %arg2[%c0_12, %c0_13] : memref<64x256xf32, #tpu.memory_space<vmem>>, vector<64x256xf32>
    %cst_14 = arith.constant dense<0.000000e+00> : vector<8x256xf32>
    %23 = tpu.matmul %16, %22, %cst_14 {dimension_numbers = #tpu.dot_dimension_numbers<[1], [0], [0], [1], [0, 0, 1, 1], [], []>} : vector<8x64xf32>, vector<64x256xf32>, vector<8x256xf32> -> vector<8x256xf32>
    %24 = arith.addf %21, %23 : vector<8x256xf32>
    %25 = vector.broadcast %15 : vector<1x256xf32> to vector<8x256xf32>
    %26 = arith.mulf %24, %25 : vector<8x256xf32>
    %27 = arith.negf %26 : vector<8x256xf32>
    %28 = math.exp %27 : vector<8x256xf32>
    %cst_15 = arith.constant 1.000000e+00 : f32
    %29 = vector.broadcast %cst_15 : f32 to vector<8x256xf32>
    %30 = arith.addf %29, %28 : vector<8x256xf32>
    %31 = arith.divf %29, %30 : vector<8x256xf32>
    %32 = vector.extract_strided_slice %31 {offsets = [0, 0], sizes = [8, 64], strides = [1, 1]} : vector<8x256xf32> to vector<8x64xf32>
    %33 = vector.extract_strided_slice %31 {offsets = [0, 64], sizes = [8, 64], strides = [1, 1]} : vector<8x256xf32> to vector<8x64xf32>
    %34 = vector.extract_strided_slice %31 {offsets = [0, 128], sizes = [8, 64], strides = [1, 1]} : vector<8x256xf32> to vector<8x64xf32>
    %cst_16 = arith.constant 2.000000e+00 : f32
    %35 = vector.broadcast %cst_16 : f32 to vector<8x64xf32>
    %36 = arith.mulf %35, %34 : vector<8x64xf32>
    %cst_17 = arith.constant 1.000000e+00 : f32
    %37 = vector.broadcast %cst_17 : f32 to vector<8x64xf32>
    %38 = arith.subf %36, %37 : vector<8x64xf32>
    %39 = vector.extract_strided_slice %31 {offsets = [0, 192], sizes = [8, 64], strides = [1, 1]} : vector<8x256xf32> to vector<8x64xf32>
    %40 = arith.mulf %33, %17 : vector<8x64xf32>
    %41 = arith.mulf %32, %38 : vector<8x64xf32>
    %42 = arith.addf %40, %41 : vector<8x64xf32>
    %cst_18 = arith.constant 2.000000e+00 : f32
    %43 = vector.broadcast %cst_18 : f32 to vector<8x64xf32>
    %44 = arith.mulf %43, %42 : vector<8x64xf32>
    %45 = arith.negf %44 : vector<8x64xf32>
    %46 = math.exp %45 : vector<8x64xf32>
    %cst_19 = arith.constant 1.000000e+00 : f32
    %47 = vector.broadcast %cst_19 : f32 to vector<8x64xf32>
    %48 = arith.addf %47, %46 : vector<8x64xf32>
    %49 = arith.divf %47, %48 : vector<8x64xf32>
    %cst_20 = arith.constant 2.000000e+00 : f32
    %50 = vector.broadcast %cst_20 : f32 to vector<8x64xf32>
    %51 = arith.mulf %50, %49 : vector<8x64xf32>
    %cst_21 = arith.constant 1.000000e+00 : f32
    %52 = vector.broadcast %cst_21 : f32 to vector<8x64xf32>
    %53 = arith.subf %51, %52 : vector<8x64xf32>
    %54 = arith.mulf %39, %53 : vector<8x64xf32>
    %c1_i32 = arith.constant 1 : i32
    %c8_i32_22 = arith.constant 8 : i32
    %55 = arith.muli %c1_i32, %c8_i32_22 : i32
    %56 = tpu.assume_multiple %55, 8 : i32
    %57 = arith.index_cast %56 : i32 to index
    %c0_23 = arith.constant 0 : index
    %58 = vector.load %arg7[%57, %c0_23] : memref<64x256xf32, #tpu.memory_space<vmem>>, vector<8x256xf32>
    %c0_24 = arith.constant 0 : index
    %c0_25 = arith.constant 0 : index
    %59 = vector.load %arg2[%c0_24, %c0_25] : memref<64x256xf32, #tpu.memory_space<vmem>>, vector<64x256xf32>
    %cst_26 = arith.constant dense<0.000000e+00> : vector<8x256xf32>
    %60 = tpu.matmul %54, %59, %cst_26 {dimension_numbers = #tpu.dot_dimension_numbers<[1], [0], [0], [1], [0, 0, 1, 1], [], []>} : vector<8x64xf32>, vector<64x256xf32>, vector<8x256xf32> -> vector<8x256xf32>
    %61 = arith.addf %58, %60 : vector<8x256xf32>
    %62 = vector.broadcast %15 : vector<1x256xf32> to vector<8x256xf32>
    %63 = arith.mulf %61, %62 : vector<8x256xf32>
    %64 = arith.negf %63 : vector<8x256xf32>
    %65 = math.exp %64 : vector<8x256xf32>
    %cst_27 = arith.constant 1.000000e+00 : f32
    %66 = vector.broadcast %cst_27 : f32 to vector<8x256xf32>
    %67 = arith.addf %66, %65 : vector<8x256xf32>
    %68 = arith.divf %66, %67 : vector<8x256xf32>
    %69 = vector.extract_strided_slice %68 {offsets = [0, 0], sizes = [8, 64], strides = [1, 1]} : vector<8x256xf32> to vector<8x64xf32>
    %70 = vector.extract_strided_slice %68 {offsets = [0, 64], sizes = [8, 64], strides = [1, 1]} : vector<8x256xf32> to vector<8x64xf32>
    %71 = vector.extract_strided_slice %68 {offsets = [0, 128], sizes = [8, 64], strides = [1, 1]} : vector<8x256xf32> to vector<8x64xf32>
    %cst_28 = arith.constant 2.000000e+00 : f32
    %72 = vector.broadcast %cst_28 : f32 to vector<8x64xf32>
    %73 = arith.mulf %72, %71 : vector<8x64xf32>
    %cst_29 = arith.constant 1.000000e+00 : f32
    %74 = vector.broadcast %cst_29 : f32 to vector<8x64xf32>
    %75 = arith.subf %73, %74 : vector<8x64xf32>
    %76 = vector.extract_strided_slice %68 {offsets = [0, 192], sizes = [8, 64], strides = [1, 1]} : vector<8x256xf32> to vector<8x64xf32>
    %77 = arith.mulf %70, %42 : vector<8x64xf32>
    %78 = arith.mulf %69, %75 : vector<8x64xf32>
    %79 = arith.addf %77, %78 : vector<8x64xf32>
    %cst_30 = arith.constant 2.000000e+00 : f32
    %80 = vector.broadcast %cst_30 : f32 to vector<8x64xf32>
    %81 = arith.mulf %80, %79 : vector<8x64xf32>
    %82 = arith.negf %81 : vector<8x64xf32>
    %83 = math.exp %82 : vector<8x64xf32>
    %cst_31 = arith.constant 1.000000e+00 : f32
    %84 = vector.broadcast %cst_31 : f32 to vector<8x64xf32>
    %85 = arith.addf %84, %83 : vector<8x64xf32>
    %86 = arith.divf %84, %85 : vector<8x64xf32>
    %cst_32 = arith.constant 2.000000e+00 : f32
    %87 = vector.broadcast %cst_32 : f32 to vector<8x64xf32>
    %88 = arith.mulf %87, %86 : vector<8x64xf32>
    %cst_33 = arith.constant 1.000000e+00 : f32
    %89 = vector.broadcast %cst_33 : f32 to vector<8x64xf32>
    %90 = arith.subf %88, %89 : vector<8x64xf32>
    %91 = arith.mulf %76, %90 : vector<8x64xf32>
    %c2_i32 = arith.constant 2 : i32
    %c8_i32_34 = arith.constant 8 : i32
    %92 = arith.muli %c2_i32, %c8_i32_34 : i32
    %93 = tpu.assume_multiple %92, 8 : i32
    %94 = arith.index_cast %93 : i32 to index
    %c0_35 = arith.constant 0 : index
    %95 = vector.load %arg7[%94, %c0_35] : memref<64x256xf32, #tpu.memory_space<vmem>>, vector<8x256xf32>
    %c0_36 = arith.constant 0 : index
    %c0_37 = arith.constant 0 : index
    %96 = vector.load %arg2[%c0_36, %c0_37] : memref<64x256xf32, #tpu.memory_space<vmem>>, vector<64x256xf32>
    %cst_38 = arith.constant dense<0.000000e+00> : vector<8x256xf32>
    %97 = tpu.matmul %91, %96, %cst_38 {dimension_numbers = #tpu.dot_dimension_numbers<[1], [0], [0], [1], [0, 0, 1, 1], [], []>} : vector<8x64xf32>, vector<64x256xf32>, vector<8x256xf32> -> vector<8x256xf32>
    %98 = arith.addf %95, %97 : vector<8x256xf32>
    %99 = vector.broadcast %15 : vector<1x256xf32> to vector<8x256xf32>
    %100 = arith.mulf %98, %99 : vector<8x256xf32>
    %101 = arith.negf %100 : vector<8x256xf32>
    %102 = math.exp %101 : vector<8x256xf32>
    %cst_39 = arith.constant 1.000000e+00 : f32
    %103 = vector.broadcast %cst_39 : f32 to vector<8x256xf32>
    %104 = arith.addf %103, %102 : vector<8x256xf32>
    %105 = arith.divf %103, %104 : vector<8x256xf32>
    %106 = vector.extract_strided_slice %105 {offsets = [0, 0], sizes = [8, 64], strides = [1, 1]} : vector<8x256xf32> to vector<8x64xf32>
    %107 = vector.extract_strided_slice %105 {offsets = [0, 64], sizes = [8, 64], strides = [1, 1]} : vector<8x256xf32> to vector<8x64xf32>
    %108 = vector.extract_strided_slice %105 {offsets = [0, 128], sizes = [8, 64], strides = [1, 1]} : vector<8x256xf32> to vector<8x64xf32>
    %cst_40 = arith.constant 2.000000e+00 : f32
    %109 = vector.broadcast %cst_40 : f32 to vector<8x64xf32>
    %110 = arith.mulf %109, %108 : vector<8x64xf32>
    %cst_41 = arith.constant 1.000000e+00 : f32
    %111 = vector.broadcast %cst_41 : f32 to vector<8x64xf32>
    %112 = arith.subf %110, %111 : vector<8x64xf32>
    %113 = vector.extract_strided_slice %105 {offsets = [0, 192], sizes = [8, 64], strides = [1, 1]} : vector<8x256xf32> to vector<8x64xf32>
    %114 = arith.mulf %107, %79 : vector<8x64xf32>
    %115 = arith.mulf %106, %112 : vector<8x64xf32>
    %116 = arith.addf %114, %115 : vector<8x64xf32>
    %cst_42 = arith.constant 2.000000e+00 : f32
    %117 = vector.broadcast %cst_42 : f32 to vector<8x64xf32>
    %118 = arith.mulf %117, %116 : vector<8x64xf32>
    %119 = arith.negf %118 : vector<8x64xf32>
    %120 = math.exp %119 : vector<8x64xf32>
    %cst_43 = arith.constant 1.000000e+00 : f32
    %121 = vector.broadcast %cst_43 : f32 to vector<8x64xf32>
    %122 = arith.addf %121, %120 : vector<8x64xf32>
    %123 = arith.divf %121, %122 : vector<8x64xf32>
    %cst_44 = arith.constant 2.000000e+00 : f32
    %124 = vector.broadcast %cst_44 : f32 to vector<8x64xf32>
    %125 = arith.mulf %124, %123 : vector<8x64xf32>
    %cst_45 = arith.constant 1.000000e+00 : f32
    %126 = vector.broadcast %cst_45 : f32 to vector<8x64xf32>
    %127 = arith.subf %125, %126 : vector<8x64xf32>
    %128 = arith.mulf %113, %127 : vector<8x64xf32>
    %c3_i32 = arith.constant 3 : i32
    %c8_i32_46 = arith.constant 8 : i32
    %129 = arith.muli %c3_i32, %c8_i32_46 : i32
    %130 = tpu.assume_multiple %129, 8 : i32
    %131 = arith.index_cast %130 : i32 to index
    %c0_47 = arith.constant 0 : index
    %132 = vector.load %arg7[%131, %c0_47] : memref<64x256xf32, #tpu.memory_space<vmem>>, vector<8x256xf32>
    %c0_48 = arith.constant 0 : index
    %c0_49 = arith.constant 0 : index
    %133 = vector.load %arg2[%c0_48, %c0_49] : memref<64x256xf32, #tpu.memory_space<vmem>>, vector<64x256xf32>
    %cst_50 = arith.constant dense<0.000000e+00> : vector<8x256xf32>
    %134 = tpu.matmul %128, %133, %cst_50 {dimension_numbers = #tpu.dot_dimension_numbers<[1], [0], [0], [1], [0, 0, 1, 1], [], []>} : vector<8x64xf32>, vector<64x256xf32>, vector<8x256xf32> -> vector<8x256xf32>
    %135 = arith.addf %132, %134 : vector<8x256xf32>
    %136 = vector.broadcast %15 : vector<1x256xf32> to vector<8x256xf32>
    %137 = arith.mulf %135, %136 : vector<8x256xf32>
    %138 = arith.negf %137 : vector<8x256xf32>
    %139 = math.exp %138 : vector<8x256xf32>
    %cst_51 = arith.constant 1.000000e+00 : f32
    %140 = vector.broadcast %cst_51 : f32 to vector<8x256xf32>
    %141 = arith.addf %140, %139 : vector<8x256xf32>
    %142 = arith.divf %140, %141 : vector<8x256xf32>
    %143 = vector.extract_strided_slice %142 {offsets = [0, 0], sizes = [8, 64], strides = [1, 1]} : vector<8x256xf32> to vector<8x64xf32>
    %144 = vector.extract_strided_slice %142 {offsets = [0, 64], sizes = [8, 64], strides = [1, 1]} : vector<8x256xf32> to vector<8x64xf32>
    %145 = vector.extract_strided_slice %142 {offsets = [0, 128], sizes = [8, 64], strides = [1, 1]} : vector<8x256xf32> to vector<8x64xf32>
    %cst_52 = arith.constant 2.000000e+00 : f32
    %146 = vector.broadcast %cst_52 : f32 to vector<8x64xf32>
    %147 = arith.mulf %146, %145 : vector<8x64xf32>
    %cst_53 = arith.constant 1.000000e+00 : f32
    %148 = vector.broadcast %cst_53 : f32 to vector<8x64xf32>
    %149 = arith.subf %147, %148 : vector<8x64xf32>
    %150 = vector.extract_strided_slice %142 {offsets = [0, 192], sizes = [8, 64], strides = [1, 1]} : vector<8x256xf32> to vector<8x64xf32>
    %151 = arith.mulf %144, %116 : vector<8x64xf32>
    %152 = arith.mulf %143, %149 : vector<8x64xf32>
    %153 = arith.addf %151, %152 : vector<8x64xf32>
    %cst_54 = arith.constant 2.000000e+00 : f32
    %154 = vector.broadcast %cst_54 : f32 to vector<8x64xf32>
    %155 = arith.mulf %154, %153 : vector<8x64xf32>
    %156 = arith.negf %155 : vector<8x64xf32>
    %157 = math.exp %156 : vector<8x64xf32>
    %cst_55 = arith.constant 1.000000e+00 : f32
    %158 = vector.broadcast %cst_55 : f32 to vector<8x64xf32>
    %159 = arith.addf %158, %157 : vector<8x64xf32>
    %160 = arith.divf %158, %159 : vector<8x64xf32>
    %cst_56 = arith.constant 2.000000e+00 : f32
    %161 = vector.broadcast %cst_56 : f32 to vector<8x64xf32>
    %162 = arith.mulf %161, %160 : vector<8x64xf32>
    %cst_57 = arith.constant 1.000000e+00 : f32
    %163 = vector.broadcast %cst_57 : f32 to vector<8x64xf32>
    %164 = arith.subf %162, %163 : vector<8x64xf32>
    %165 = arith.mulf %150, %164 : vector<8x64xf32>
    %c4_i32 = arith.constant 4 : i32
    %c8_i32_58 = arith.constant 8 : i32
    %166 = arith.muli %c4_i32, %c8_i32_58 : i32
    %167 = tpu.assume_multiple %166, 8 : i32
    %168 = arith.index_cast %167 : i32 to index
    %c0_59 = arith.constant 0 : index
    %169 = vector.load %arg7[%168, %c0_59] : memref<64x256xf32, #tpu.memory_space<vmem>>, vector<8x256xf32>
    %c0_60 = arith.constant 0 : index
    %c0_61 = arith.constant 0 : index
    %170 = vector.load %arg2[%c0_60, %c0_61] : memref<64x256xf32, #tpu.memory_space<vmem>>, vector<64x256xf32>
    %cst_62 = arith.constant dense<0.000000e+00> : vector<8x256xf32>
    %171 = tpu.matmul %165, %170, %cst_62 {dimension_numbers = #tpu.dot_dimension_numbers<[1], [0], [0], [1], [0, 0, 1, 1], [], []>} : vector<8x64xf32>, vector<64x256xf32>, vector<8x256xf32> -> vector<8x256xf32>
    %172 = arith.addf %169, %171 : vector<8x256xf32>
    %173 = vector.broadcast %15 : vector<1x256xf32> to vector<8x256xf32>
    %174 = arith.mulf %172, %173 : vector<8x256xf32>
    %175 = arith.negf %174 : vector<8x256xf32>
    %176 = math.exp %175 : vector<8x256xf32>
    %cst_63 = arith.constant 1.000000e+00 : f32
    %177 = vector.broadcast %cst_63 : f32 to vector<8x256xf32>
    %178 = arith.addf %177, %176 : vector<8x256xf32>
    %179 = arith.divf %177, %178 : vector<8x256xf32>
    %180 = vector.extract_strided_slice %179 {offsets = [0, 0], sizes = [8, 64], strides = [1, 1]} : vector<8x256xf32> to vector<8x64xf32>
    %181 = vector.extract_strided_slice %179 {offsets = [0, 64], sizes = [8, 64], strides = [1, 1]} : vector<8x256xf32> to vector<8x64xf32>
    %182 = vector.extract_strided_slice %179 {offsets = [0, 128], sizes = [8, 64], strides = [1, 1]} : vector<8x256xf32> to vector<8x64xf32>
    %cst_64 = arith.constant 2.000000e+00 : f32
    %183 = vector.broadcast %cst_64 : f32 to vector<8x64xf32>
    %184 = arith.mulf %183, %182 : vector<8x64xf32>
    %cst_65 = arith.constant 1.000000e+00 : f32
    %185 = vector.broadcast %cst_65 : f32 to vector<8x64xf32>
    %186 = arith.subf %184, %185 : vector<8x64xf32>
    %187 = vector.extract_strided_slice %179 {offsets = [0, 192], sizes = [8, 64], strides = [1, 1]} : vector<8x256xf32> to vector<8x64xf32>
    %188 = arith.mulf %181, %153 : vector<8x64xf32>
    %189 = arith.mulf %180, %186 : vector<8x64xf32>
    %190 = arith.addf %188, %189 : vector<8x64xf32>
    %cst_66 = arith.constant 2.000000e+00 : f32
    %191 = vector.broadcast %cst_66 : f32 to vector<8x64xf32>
    %192 = arith.mulf %191, %190 : vector<8x64xf32>
    %193 = arith.negf %192 : vector<8x64xf32>
    %194 = math.exp %193 : vector<8x64xf32>
    %cst_67 = arith.constant 1.000000e+00 : f32
    %195 = vector.broadcast %cst_67 : f32 to vector<8x64xf32>
    %196 = arith.addf %195, %194 : vector<8x64xf32>
    %197 = arith.divf %195, %196 : vector<8x64xf32>
    %cst_68 = arith.constant 2.000000e+00 : f32
    %198 = vector.broadcast %cst_68 : f32 to vector<8x64xf32>
    %199 = arith.mulf %198, %197 : vector<8x64xf32>
    %cst_69 = arith.constant 1.000000e+00 : f32
    %200 = vector.broadcast %cst_69 : f32 to vector<8x64xf32>
    %201 = arith.subf %199, %200 : vector<8x64xf32>
    %202 = arith.mulf %187, %201 : vector<8x64xf32>
    %c5_i32 = arith.constant 5 : i32
    %c8_i32_70 = arith.constant 8 : i32
    %203 = arith.muli %c5_i32, %c8_i32_70 : i32
    %204 = tpu.assume_multiple %203, 8 : i32
    %205 = arith.index_cast %204 : i32 to index
    %c0_71 = arith.constant 0 : index
    %206 = vector.load %arg7[%205, %c0_71] : memref<64x256xf32, #tpu.memory_space<vmem>>, vector<8x256xf32>
    %c0_72 = arith.constant 0 : index
    %c0_73 = arith.constant 0 : index
    %207 = vector.load %arg2[%c0_72, %c0_73] : memref<64x256xf32, #tpu.memory_space<vmem>>, vector<64x256xf32>
    %cst_74 = arith.constant dense<0.000000e+00> : vector<8x256xf32>
    %208 = tpu.matmul %202, %207, %cst_74 {dimension_numbers = #tpu.dot_dimension_numbers<[1], [0], [0], [1], [0, 0, 1, 1], [], []>} : vector<8x64xf32>, vector<64x256xf32>, vector<8x256xf32> -> vector<8x256xf32>
    %209 = arith.addf %206, %208 : vector<8x256xf32>
    %210 = vector.broadcast %15 : vector<1x256xf32> to vector<8x256xf32>
    %211 = arith.mulf %209, %210 : vector<8x256xf32>
    %212 = arith.negf %211 : vector<8x256xf32>
    %213 = math.exp %212 : vector<8x256xf32>
    %cst_75 = arith.constant 1.000000e+00 : f32
    %214 = vector.broadcast %cst_75 : f32 to vector<8x256xf32>
    %215 = arith.addf %214, %213 : vector<8x256xf32>
    %216 = arith.divf %214, %215 : vector<8x256xf32>
    %217 = vector.extract_strided_slice %216 {offsets = [0, 0], sizes = [8, 64], strides = [1, 1]} : vector<8x256xf32> to vector<8x64xf32>
    %218 = vector.extract_strided_slice %216 {offsets = [0, 64], sizes = [8, 64], strides = [1, 1]} : vector<8x256xf32> to vector<8x64xf32>
    %219 = vector.extract_strided_slice %216 {offsets = [0, 128], sizes = [8, 64], strides = [1, 1]} : vector<8x256xf32> to vector<8x64xf32>
    %cst_76 = arith.constant 2.000000e+00 : f32
    %220 = vector.broadcast %cst_76 : f32 to vector<8x64xf32>
    %221 = arith.mulf %220, %219 : vector<8x64xf32>
    %cst_77 = arith.constant 1.000000e+00 : f32
    %222 = vector.broadcast %cst_77 : f32 to vector<8x64xf32>
    %223 = arith.subf %221, %222 : vector<8x64xf32>
    %224 = vector.extract_strided_slice %216 {offsets = [0, 192], sizes = [8, 64], strides = [1, 1]} : vector<8x256xf32> to vector<8x64xf32>
    %225 = arith.mulf %218, %190 : vector<8x64xf32>
    %226 = arith.mulf %217, %223 : vector<8x64xf32>
    %227 = arith.addf %225, %226 : vector<8x64xf32>
    %cst_78 = arith.constant 2.000000e+00 : f32
    %228 = vector.broadcast %cst_78 : f32 to vector<8x64xf32>
    %229 = arith.mulf %228, %227 : vector<8x64xf32>
    %230 = arith.negf %229 : vector<8x64xf32>
    %231 = math.exp %230 : vector<8x64xf32>
    %cst_79 = arith.constant 1.000000e+00 : f32
    %232 = vector.broadcast %cst_79 : f32 to vector<8x64xf32>
    %233 = arith.addf %232, %231 : vector<8x64xf32>
    %234 = arith.divf %232, %233 : vector<8x64xf32>
    %cst_80 = arith.constant 2.000000e+00 : f32
    %235 = vector.broadcast %cst_80 : f32 to vector<8x64xf32>
    %236 = arith.mulf %235, %234 : vector<8x64xf32>
    %cst_81 = arith.constant 1.000000e+00 : f32
    %237 = vector.broadcast %cst_81 : f32 to vector<8x64xf32>
    %238 = arith.subf %236, %237 : vector<8x64xf32>
    %239 = arith.mulf %224, %238 : vector<8x64xf32>
    %c6_i32 = arith.constant 6 : i32
    %c8_i32_82 = arith.constant 8 : i32
    %240 = arith.muli %c6_i32, %c8_i32_82 : i32
    %241 = tpu.assume_multiple %240, 8 : i32
    %242 = arith.index_cast %241 : i32 to index
    %c0_83 = arith.constant 0 : index
    %243 = vector.load %arg7[%242, %c0_83] : memref<64x256xf32, #tpu.memory_space<vmem>>, vector<8x256xf32>
    %c0_84 = arith.constant 0 : index
    %c0_85 = arith.constant 0 : index
    %244 = vector.load %arg2[%c0_84, %c0_85] : memref<64x256xf32, #tpu.memory_space<vmem>>, vector<64x256xf32>
    %cst_86 = arith.constant dense<0.000000e+00> : vector<8x256xf32>
    %245 = tpu.matmul %239, %244, %cst_86 {dimension_numbers = #tpu.dot_dimension_numbers<[1], [0], [0], [1], [0, 0, 1, 1], [], []>} : vector<8x64xf32>, vector<64x256xf32>, vector<8x256xf32> -> vector<8x256xf32>
    %246 = arith.addf %243, %245 : vector<8x256xf32>
    %247 = vector.broadcast %15 : vector<1x256xf32> to vector<8x256xf32>
    %248 = arith.mulf %246, %247 : vector<8x256xf32>
    %249 = arith.negf %248 : vector<8x256xf32>
    %250 = math.exp %249 : vector<8x256xf32>
    %cst_87 = arith.constant 1.000000e+00 : f32
    %251 = vector.broadcast %cst_87 : f32 to vector<8x256xf32>
    %252 = arith.addf %251, %250 : vector<8x256xf32>
    %253 = arith.divf %251, %252 : vector<8x256xf32>
    %254 = vector.extract_strided_slice %253 {offsets = [0, 0], sizes = [8, 64], strides = [1, 1]} : vector<8x256xf32> to vector<8x64xf32>
    %255 = vector.extract_strided_slice %253 {offsets = [0, 64], sizes = [8, 64], strides = [1, 1]} : vector<8x256xf32> to vector<8x64xf32>
    %256 = vector.extract_strided_slice %253 {offsets = [0, 128], sizes = [8, 64], strides = [1, 1]} : vector<8x256xf32> to vector<8x64xf32>
    %cst_88 = arith.constant 2.000000e+00 : f32
    %257 = vector.broadcast %cst_88 : f32 to vector<8x64xf32>
    %258 = arith.mulf %257, %256 : vector<8x64xf32>
    %cst_89 = arith.constant 1.000000e+00 : f32
    %259 = vector.broadcast %cst_89 : f32 to vector<8x64xf32>
    %260 = arith.subf %258, %259 : vector<8x64xf32>
    %261 = vector.extract_strided_slice %253 {offsets = [0, 192], sizes = [8, 64], strides = [1, 1]} : vector<8x256xf32> to vector<8x64xf32>
    %262 = arith.mulf %255, %227 : vector<8x64xf32>
    %263 = arith.mulf %254, %260 : vector<8x64xf32>
    %264 = arith.addf %262, %263 : vector<8x64xf32>
    %cst_90 = arith.constant 2.000000e+00 : f32
    %265 = vector.broadcast %cst_90 : f32 to vector<8x64xf32>
    %266 = arith.mulf %265, %264 : vector<8x64xf32>
    %267 = arith.negf %266 : vector<8x64xf32>
    %268 = math.exp %267 : vector<8x64xf32>
    %cst_91 = arith.constant 1.000000e+00 : f32
    %269 = vector.broadcast %cst_91 : f32 to vector<8x64xf32>
    %270 = arith.addf %269, %268 : vector<8x64xf32>
    %271 = arith.divf %269, %270 : vector<8x64xf32>
    %cst_92 = arith.constant 2.000000e+00 : f32
    %272 = vector.broadcast %cst_92 : f32 to vector<8x64xf32>
    %273 = arith.mulf %272, %271 : vector<8x64xf32>
    %cst_93 = arith.constant 1.000000e+00 : f32
    %274 = vector.broadcast %cst_93 : f32 to vector<8x64xf32>
    %275 = arith.subf %273, %274 : vector<8x64xf32>
    %276 = arith.mulf %261, %275 : vector<8x64xf32>
    %c7_i32 = arith.constant 7 : i32
    %c8_i32_94 = arith.constant 8 : i32
    %277 = arith.muli %c7_i32, %c8_i32_94 : i32
    %278 = tpu.assume_multiple %277, 8 : i32
    %279 = arith.index_cast %278 : i32 to index
    %c0_95 = arith.constant 0 : index
    %280 = vector.load %arg7[%279, %c0_95] : memref<64x256xf32, #tpu.memory_space<vmem>>, vector<8x256xf32>
    %c0_96 = arith.constant 0 : index
    %c0_97 = arith.constant 0 : index
    %281 = vector.load %arg2[%c0_96, %c0_97] : memref<64x256xf32, #tpu.memory_space<vmem>>, vector<64x256xf32>
    %cst_98 = arith.constant dense<0.000000e+00> : vector<8x256xf32>
    %282 = tpu.matmul %276, %281, %cst_98 {dimension_numbers = #tpu.dot_dimension_numbers<[1], [0], [0], [1], [0, 0, 1, 1], [], []>} : vector<8x64xf32>, vector<64x256xf32>, vector<8x256xf32> -> vector<8x256xf32>
    %283 = arith.addf %280, %282 : vector<8x256xf32>
    %284 = vector.broadcast %15 : vector<1x256xf32> to vector<8x256xf32>
    %285 = arith.mulf %283, %284 : vector<8x256xf32>
    %286 = arith.negf %285 : vector<8x256xf32>
    %287 = math.exp %286 : vector<8x256xf32>
    %cst_99 = arith.constant 1.000000e+00 : f32
    %288 = vector.broadcast %cst_99 : f32 to vector<8x256xf32>
    %289 = arith.addf %288, %287 : vector<8x256xf32>
    %290 = arith.divf %288, %289 : vector<8x256xf32>
    %291 = vector.extract_strided_slice %290 {offsets = [0, 0], sizes = [8, 64], strides = [1, 1]} : vector<8x256xf32> to vector<8x64xf32>
    %292 = vector.extract_strided_slice %290 {offsets = [0, 64], sizes = [8, 64], strides = [1, 1]} : vector<8x256xf32> to vector<8x64xf32>
    %293 = vector.extract_strided_slice %290 {offsets = [0, 128], sizes = [8, 64], strides = [1, 1]} : vector<8x256xf32> to vector<8x64xf32>
    %cst_100 = arith.constant 2.000000e+00 : f32
    %294 = vector.broadcast %cst_100 : f32 to vector<8x64xf32>
    %295 = arith.mulf %294, %293 : vector<8x64xf32>
    %cst_101 = arith.constant 1.000000e+00 : f32
    %296 = vector.broadcast %cst_101 : f32 to vector<8x64xf32>
    %297 = arith.subf %295, %296 : vector<8x64xf32>
    %298 = vector.extract_strided_slice %290 {offsets = [0, 192], sizes = [8, 64], strides = [1, 1]} : vector<8x256xf32> to vector<8x64xf32>
    %299 = arith.mulf %292, %264 : vector<8x64xf32>
    %300 = arith.mulf %291, %297 : vector<8x64xf32>
    %301 = arith.addf %299, %300 : vector<8x64xf32>
    %cst_102 = arith.constant 2.000000e+00 : f32
    %302 = vector.broadcast %cst_102 : f32 to vector<8x64xf32>
    %303 = arith.mulf %302, %301 : vector<8x64xf32>
    %304 = arith.negf %303 : vector<8x64xf32>
    %305 = math.exp %304 : vector<8x64xf32>
    %cst_103 = arith.constant 1.000000e+00 : f32
    %306 = vector.broadcast %cst_103 : f32 to vector<8x64xf32>
    %307 = arith.addf %306, %305 : vector<8x64xf32>
    %308 = arith.divf %306, %307 : vector<8x64xf32>
    %cst_104 = arith.constant 2.000000e+00 : f32
    %309 = vector.broadcast %cst_104 : f32 to vector<8x64xf32>
    %310 = arith.mulf %309, %308 : vector<8x64xf32>
    %cst_105 = arith.constant 1.000000e+00 : f32
    %311 = vector.broadcast %cst_105 : f32 to vector<8x64xf32>
    %312 = arith.subf %310, %311 : vector<8x64xf32>
    %313 = arith.mulf %298, %312 : vector<8x64xf32>
    %c8_i32_106 = arith.constant 8 : i32
    %c0_107 = arith.constant 0 : index
    %c0_108 = arith.constant 0 : index
    %314 = vector.load %arg4[%c0_107, %c0_108] : memref<64x10xf32, #tpu.memory_space<vmem>>, vector<64x10xf32>
    %cst_109 = arith.constant dense<0.000000e+00> : vector<8x10xf32>
    %315 = tpu.matmul %313, %314, %cst_109 {dimension_numbers = #tpu.dot_dimension_numbers<[1], [0], [0], [1], [0, 0, 1, 1], [], []>} : vector<8x64xf32>, vector<64x10xf32>, vector<8x10xf32> -> vector<8x10xf32>
    %c0_110 = arith.constant 0 : index
    %c0_111 = arith.constant 0 : index
    %316 = vector.load %arg5[%c0_110, %c0_111] : memref<1x10xf32, #tpu.memory_space<vmem>>, vector<1x10xf32>
    %317 = vector.broadcast %316 : vector<1x10xf32> to vector<8x10xf32>
    %318 = arith.addf %315, %317 : vector<8x10xf32>
    %319 = vector.extract_strided_slice %318 {offsets = [0, 0], sizes = [2, 10], strides = [1, 1]} : vector<8x10xf32> to vector<2x10xf32>
    %c0_112 = arith.constant 0 : index
    %c0_113 = arith.constant 0 : index
    %320 = vector.load %arg6[%c0_112, %c0_113] : memref<2x10xf32, #tpu.memory_space<vmem>>, vector<2x10xf32>
    tpu.vector_store %arg6[%c0_112, %c0_113], %319 {strides = array<i32>} : memref<2x10xf32, #tpu.memory_space<vmem>>, vector<2x10xf32>,
    return
  }
}

</mosaic_0001>

<llo_original>
// kernel: rnn_forward.1
$region0: #{rnn_forward.1}
  #allocation0 [shape = 'u32[]', space=smem, size = 0x4, offset = 0x4, fixed_abs, tag = 'smem constant byte address 0x4 - core index']
  #allocation1 [shape = 'u32[144,128]{1,0:T(1,128)}', space=vmem, size = 0x12000, scoped, tag = 'internal scratch']
  #allocation2 [shape = 'f32[64,256]{1,0:T(8,128)}', space=vmem, size = 0x10000, scoped, tag = 'scratch operand']
  %s0 = inlined_call_operand.vmem [shape: f32[64,28], index: 0, kind: input, shape index: {}]
  %s1 = inlined_call_operand.vmem [shape: f32[28,256], index: 1, kind: input, shape index: {}]
  %s2 = inlined_call_operand.vmem [shape: f32[64,256], index: 2, kind: input, shape index: {}]
  %s3 = inlined_call_operand.vmem [shape: f32[1,256], index: 3, kind: input, shape index: {}]
  %s4 = inlined_call_operand.vmem [shape: f32[64,10], index: 4, kind: input, shape index: {}]
  %s5 = inlined_call_operand.vmem [shape: f32[1,10], index: 5, kind: input, shape index: {}]
  %s6 = inlined_call_operand.hbm [shape: f32[2,10], index: 6, kind: output, shape index: {}]
  %s7 = sld [smem:[#allocation0]]
  $region34: #{rnn_forward.1} parent=0
    _
  %s9 = ssub.s32 1, %s7
  %s10 = scalar_select 0, %s9, %s7
  $region1: #{rnn_forward.1} parent=0
    #allocation3 [shape = 'u8[1024]{0}', space=vmem, size = 0x400, scoped, tag = 'output window, operand 0, single buffered']
    #allocation4 [shape = 's32[1]{0}', space=sflag, size = 0x4, scoped, tag = 'scoped memory for rnn_forward.1']
    %11 = vsyncpa [#allocation4], 0
    // Predicated region
    $region2: #{rnn_forward.1} parent=1 // pred_check
      _
    $region3: #{rnn_forward.1} parent=1 // pred_check_branch
      %13 = sbr.rel (0) target = $region5
    $region4: #{rnn_forward.1} parent=1 // pred_region
      _
    $region5: #{rnn_forward.1} parent=1 // pred_fallthru
      _
    // Predicated region
    $region6: #{rnn_forward.1} parent=1 // pred_check
      _
    $region7: #{rnn_forward.1} parent=1 // pred_check_branch
      %15 = sbr.rel (0) target = $region9
    $region8: #{rnn_forward.1} parent=1 // pred_region
      _
    $region9: #{rnn_forward.1} parent=1 // pred_fallthru
      _
    // Predicated region
    $region10: #{rnn_forward.1} parent=1 // pred_check
      _
    $region11: #{rnn_forward.1} parent=1 // pred_check_branch
      %17 = sbr.rel (0) target = $region13
    $region12: #{rnn_forward.1} parent=1 // pred_region
      _
    $region13: #{rnn_forward.1} parent=1 // pred_fallthru
      _
    // Predicated region
    $region14: #{rnn_forward.1} parent=1 // pred_check
      _
    $region15: #{rnn_forward.1} parent=1 // pred_check_branch
      %19 = sbr.rel (0) target = $region17
    $region16: #{rnn_forward.1} parent=1 // pred_region
      _
    $region17: #{rnn_forward.1} parent=1 // pred_fallthru
      _
    // Predicated region
    $region18: #{rnn_forward.1} parent=1 // pred_check
      _
    $region19: #{rnn_forward.1} parent=1 // pred_check_branch
      %21 = sbr.rel (0) target = $region21
    $region20: #{rnn_forward.1} parent=1 // pred_region
      _
    $region21: #{rnn_forward.1} parent=1 // pred_fallthru
      _
    // Predicated region
    $region22: #{rnn_forward.1} parent=1 // pred_check
      _
    $region23: #{rnn_forward.1} parent=1 // pred_check_branch
      %23 = sbr.rel (0) target = $region25
    $region24: #{rnn_forward.1} parent=1 // pred_region
      _
    $region25: #{rnn_forward.1} parent=1 // pred_fallthru
      _
    %v24 = vld [vmem:[%s0] sm:$0xff]
    %v25 = vld [vmem:[%s0 + $0x8] sm:$0xff]
    %v26 = vld [vmem:[%s0 + $0x10] sm:$0xff]
    %v27 = vld [vmem:[%s0 + $0x18] sm:$0xff]
    %v28 = vld [vmem:[%s0 + $0x20] sm:$0xff]
    %v29 = vld [vmem:[%s0 + $0x28] sm:$0xff]
    %v30 = vld [vmem:[%s0 + $0x30] sm:$0xff]
    %v31 = vld [vmem:[%s0 + $0x38] sm:$0xff]
    %v32 = vld [vmem:[%s1] sm:$0xff]
    %v33 = vld [vmem:[%s1 + $0x8] sm:$0xff]
    %v34 = vld [vmem:[%s1 + $0x10] sm:$0xff]
    %v35 = vld [vmem:[%s1 + $0x18] sm:$0xff]
    %v36 = vld [vmem:[%s1 + $0x20] sm:$0xff]
    %v37 = vld [vmem:[%s1 + $0x28] sm:$0xff]
    %v38 = vld [vmem:[%s1 + $0x30] sm:$0xf]
    %v39 = vld [vmem:[%s1 + $0x38] sm:$0xf]
    %v40 = vld [vmem:[%s3] sm:$0x3]
    %v42 = vlaneseq
    %v43 = vshrl.u32 %v42, 7
    %v44 = vsub.s32 0, %v43
    %v45 = vrot.slane %v40, %v44
    %v46 = vlaneseq
    %v47 = vshrl.u32 %v46, 7
    %v48 = vsub.s32 1, %v47
    %v49 = vrot.slane %v40, %v48
    %vm52 = vcmask 228352
    %v54 = vsel %vm52, %v24, 0
    %v57 = vsel %vm52, %v25, 0
    %v60 = vsel %vm52, %v26, 0
    %v63 = vsel %vm52, %v27, 0
    %v66 = vsel %vm52, %v28, 0
    %v69 = vsel %vm52, %v29, 0
    %v72 = vsel %vm52, %v30, 0
    %v75 = vsel %vm52, %v31, 0
    %vm77 = vcmask 1043456
    %v79 = vsel %vm77, %v38, 0
    %v82 = vsel %vm77, %v39, 0
    %84 = vmatprep.subr.mxu0 0.0
    %85 = vmatpush1.msra.mxu0 0.0
    %86 = vmatprep.subr.mxu0 0.0
    %87 = vmatpush1.msra.mxu0 0.0
    %88 = vmatprep.subr.mxu0 0.0
    %89 = vmatpush1.msra.mxu0 0.0
    %90 = vmatprep.subr.mxu0 0.0
    %91 = vmatpush1.msra.mxu0 0.0
    %92 = vmatprep.subr.mxu0 0.0
    %93 = vmatpush1.msra.mxu0 0.0
    %94 = vmatprep.subr.mxu0 0.0
    %95 = vmatpush1.msra.mxu0 0.0
    %96 = vmatprep.subr.mxu0 0.0
    %97 = vmatpush1.msra.mxu0 0.0
    %98 = vmatprep.subr.mxu0 0.0
    %99 = vmatpush1.msra.mxu0 0.0
    %100 = vmatprep.subr.mxu0 0.0
    %101 = vmatpush1.msra.mxu0 0.0
    %102 = vmatprep.subr.mxu0 0.0
    %103 = vmatpush1.msra.mxu0 0.0
    %104 = vmatprep.subr.mxu0 0.0
    %105 = vmatpush1.msra.mxu0 0.0
    %106 = vmatprep.subr.mxu0 0.0
    %107 = vmatpush1.msra.mxu0 0.0
    %108 = vmatprep.subr.mxu0 %v82
    %109 = vmatpush1.msra.mxu0 %v79
    %110 = vmatprep.subr.mxu0 %v37
    %111 = vmatpush1.msra.mxu0 %v36
    %112 = vmatprep.subr.mxu0 %v35
    %113 = vmatpush1.msra.mxu0 %v34
    %114 = vmatprep.subr.mxu0 %v33
    %115 = vmatpush1.msra.mxu0 %v32
    %116 = vmatprep.subr.mxu0 0.0
    %117 = vmatpush2.msra.mxu0 0.0
    %118 = vmatprep.subr.mxu0 0.0
    %119 = vmatpush2.msra.mxu0 0.0
    %120 = vmatprep.subr.mxu0 0.0
    %121 = vmatpush2.msra.mxu0 0.0
    %122 = vmatprep.subr.mxu0 0.0
    %123 = vmatpush2.msra.mxu0 0.0
    %124 = vmatprep.subr.mxu0 0.0
    %125 = vmatpush2.msra.mxu0 0.0
    %126 = vmatprep.subr.mxu0 0.0
    %127 = vmatpush2.msra.mxu0 0.0
    %128 = vmatprep.subr.mxu0 0.0
    %129 = vmatpush2.msra.mxu0 0.0
    %130 = vmatprep.subr.mxu0 0.0
    %131 = vmatpush2.msra.mxu0 0.0
    %132 = vmatprep.subr.mxu0 0.0
    %133 = vmatpush2.msra.mxu0 0.0
    %134 = vmatprep.subr.mxu0 0.0
    %135 = vmatpush2.msra.mxu0 0.0
    %136 = vmatprep.subr.mxu0 0.0
    %137 = vmatpush2.msra.mxu0 0.0
    %138 = vmatprep.subr.mxu0 0.0
    %139 = vmatpush2.msra.mxu0 0.0
    %140 = vmatprep.subr.mxu0 0.0
    %141 = vmatpush2.msra.mxu0 0.0
    %142 = vmatprep.subr.mxu0 0.0
    %143 = vmatpush2.msra.mxu0 0.0
    %144 = vmatprep.subr.mxu0 0.0
    %145 = vmatpush2.msra.mxu0 0.0
    %146 = vmatprep.subr.mxu0 0.0
    %147 = vmatpush2.msra.mxu0 0.0
    %148 = vmatprep.mubr.f32.mxu0 0.0
    %149 = vmatmul.mubr.f32.gmra.mxu0 %v54
    %v150 = vpop.f32.mrf.mxu0
    %v151 = vadd.f32 %v45, %v150
    %v152 = vpop.f32.mrf.mxu0
    %v153 = vadd.f32 %v49, %v152
    %154 = vmatprep.mubr.f32.mxu0 0.0
    %155 = vmatmul.mubr.f32.gmra.mxu0 %v57
    %v156 = vpop.f32.mrf.mxu0
    %v157 = vadd.f32 %v45, %v156
    %v158 = vpop.f32.mrf.mxu0
    %v159 = vadd.f32 %v49, %v158
    %160 = vmatprep.mubr.f32.mxu0 0.0
    %161 = vmatmul.mubr.f32.gmra.mxu0 %v60
    %v162 = vpop.f32.mrf.mxu0
    %v163 = vadd.f32 %v45, %v162
    %v164 = vpop.f32.mrf.mxu0
    %v165 = vadd.f32 %v49, %v164
    %166 = vmatprep.mubr.f32.mxu0 0.0
    %167 = vmatmul.mubr.f32.gmra.mxu0 %v63
    %v168 = vpop.f32.mrf.mxu0
    %v169 = vadd.f32 %v45, %v168
    %v170 = vpop.f32.mrf.mxu0
    %v171 = vadd.f32 %v49, %v170
    %172 = vmatprep.mubr.f32.mxu0 0.0
    %173 = vmatmul.mubr.f32.gmra.mxu0 %v66
    %v174 = vpop.f32.mrf.mxu0
    %v175 = vadd.f32 %v45, %v174
    %v176 = vpop.f32.mrf.mxu0
    %v177 = vadd.f32 %v49, %v176
    %178 = vmatprep.mubr.f32.mxu0 0.0
    %179 = vmatmul.mubr.f32.gmra.mxu0 %v69
    %v180 = vpop.f32.mrf.mxu0
    %v181 = vadd.f32 %v45, %v180
    %v182 = vpop.f32.mrf.mxu0
    %v183 = vadd.f32 %v49, %v182
    %184 = vmatprep.mubr.f32.mxu0 0.0
    %185 = vmatmul.mubr.f32.gmra.mxu0 %v72
    %v186 = vpop.f32.mrf.mxu0
    %v187 = vadd.f32 %v45, %v186
    %v188 = vpop.f32.mrf.mxu0
    %v189 = vadd.f32 %v49, %v188
    %190 = vmatprep.mubr.f32.mxu0 0.0
    %191 = vmatmul.mubr.f32.gmra.mxu0 %v75
    %v192 = vpop.f32.mrf.mxu0
    %v193 = vadd.f32 %v45, %v192
    %v194 = vpop.f32.mrf.mxu0
    %v195 = vadd.f32 %v49, %v194
    %196 = vdwg.mxu0
    %197 = vst [vmem:[#allocation2] sm:$0xff] %v151
    %198 = vst [vmem:[#allocation2 + $0x8] sm:$0xff] %v153
    %199 = vst [vmem:[#allocation2 + $0x10] sm:$0xff] %v157
    %200 = vst [vmem:[#allocation2 + $0x18] sm:$0xff] %v159
    %201 = vst [vmem:[#allocation2 + $0x20] sm:$0xff] %v163
    %202 = vst [vmem:[#allocation2 + $0x28] sm:$0xff] %v165
    %203 = vst [vmem:[#allocation2 + $0x30] sm:$0xff] %v169
    %204 = vst [vmem:[#allocation2 + $0x38] sm:$0xff] %v171
    %205 = vst [vmem:[#allocation2 + $0x40] sm:$0xff] %v175
    %206 = vst [vmem:[#allocation2 + $0x48] sm:$0xff] %v177
    %207 = vst [vmem:[#allocation2 + $0x50] sm:$0xff] %v181
    %208 = vst [vmem:[#allocation2 + $0x58] sm:$0xff] %v183
    %209 = vst [vmem:[#allocation2 + $0x60] sm:$0xff] %v187
    %210 = vst [vmem:[#allocation2 + $0x68] sm:$0xff] %v189
    %211 = vst [vmem:[#allocation2 + $0x70] sm:$0xff] %v193
    %212 = vst [vmem:[#allocation2 + $0x78] sm:$0xff] %v195
    %v213 = vlaneseq
    %v214 = vand.u32 %v213, 127
    %v215 = vadd.s32 %v214, 128
    %vm216 = vcmp.ge.s32.totalorder %v214, 128
    %vm217 = vcmp.ge.s32.totalorder %v215, 128
    %vm218 = vcmp.lt.s32.totalorder %v214, 192
    %vm219 = vcmp.lt.s32.totalorder %v215, 192
    %vm220 = vmand %vm216, %vm218
    %vm221 = vmand %vm217, %vm219
    %v222 = vsel %vm220, 2.0, 1.0
    %v223 = vsel %vm221, 2.0, 1.0
    %s224 = smul.u32 0, 2
    %s225 = smul.addr %s224, 8
    %s226 = scalar_lea.vmem [#allocation2], %s225
    %v227 = vld [vmem:[%s226] sm:$0xff]
    %v228 = vld [vmem:[%s226 + $0x8] sm:$0xff]
    %v229 = vld [vmem:[%s2] sm:$0xff]
    %v230 = vld [vmem:[%s2 + $0x8] sm:$0xff]
    %v231 = vld [vmem:[%s2 + $0x10] sm:$0xff]
    %v232 = vld [vmem:[%s2 + $0x18] sm:$0xff]
    %v233 = vld [vmem:[%s2 + $0x20] sm:$0xff]
    %v234 = vld [vmem:[%s2 + $0x28] sm:$0xff]
    %v235 = vld [vmem:[%s2 + $0x30] sm:$0xff]
    %v236 = vld [vmem:[%s2 + $0x38] sm:$0xff]
    %v237 = vld [vmem:[%s2 + $0x40] sm:$0xff]
    %v238 = vld [vmem:[%s2 + $0x48] sm:$0xff]
    %v239 = vld [vmem:[%s2 + $0x50] sm:$0xff]
    %v240 = vld [vmem:[%s2 + $0x58] sm:$0xff]
    %v241 = vld [vmem:[%s2 + $0x60] sm:$0xff]
    %v242 = vld [vmem:[%s2 + $0x68] sm:$0xff]
    %v243 = vld [vmem:[%s2 + $0x70] sm:$0xff]
    %v244 = vld [vmem:[%s2 + $0x78] sm:$0xff]
    %vm245 = vcmask 523264
    %v247 = vsel %vm245, 0.0, 0
    %249 = vmatprep.subr.mxu0 0.0
    %250 = vmatpush1.msra.mxu0 0.0
    %251 = vmatprep.subr.mxu0 0.0
    %252 = vmatpush1.msra.mxu0 0.0
    %253 = vmatprep.subr.mxu0 0.0
    %254 = vmatpush1.msra.mxu0 0.0
    %255 = vmatprep.subr.mxu0 0.0
    %256 = vmatpush1.msra.mxu0 0.0
    %257 = vmatprep.subr.mxu0 0.0
    %258 = vmatpush1.msra.mxu0 0.0
    %259 = vmatprep.subr.mxu0 0.0
    %260 = vmatpush1.msra.mxu0 0.0
    %261 = vmatprep.subr.mxu0 0.0
    %262 = vmatpush1.msra.mxu0 0.0
    %263 = vmatprep.subr.mxu0 0.0
    %264 = vmatpush1.msra.mxu0 0.0
    %265 = vmatprep.subr.mxu0 %v244
    %266 = vmatpush1.msra.mxu0 %v243
    %267 = vmatprep.subr.mxu0 %v242
    %268 = vmatpush1.msra.mxu0 %v241
    %269 = vmatprep.subr.mxu0 %v240
    %270 = vmatpush1.msra.mxu0 %v239
    %271 = vmatprep.subr.mxu0 %v238
    %272 = vmatpush1.msra.mxu0 %v237
    %273 = vmatprep.subr.mxu0 %v236
    %274 = vmatpush1.msra.mxu0 %v235
    %275 = vmatprep.subr.mxu0 %v234
    %276 = vmatpush1.msra.mxu0 %v233
    %277 = vmatprep.subr.mxu0 %v232
    %278 = vmatpush1.msra.mxu0 %v231
    %279 = vmatprep.subr.mxu0 %v230
    %280 = vmatpush1.msra.mxu0 %v229
    %281 = vmatprep.subr.mxu0 0.0
    %282 = vmatpush2.msra.mxu0 0.0
    %283 = vmatprep.subr.mxu0 0.0
    %284 = vmatpush2.msra.mxu0 0.0
    %285 = vmatprep.subr.mxu0 0.0
    %286 = vmatpush2.msra.mxu0 0.0
    %287 = vmatprep.subr.mxu0 0.0
    %288 = vmatpush2.msra.mxu0 0.0
    %289 = vmatprep.subr.mxu0 0.0
    %290 = vmatpush2.msra.mxu0 0.0
    %291 = vmatprep.subr.mxu0 0.0
    %292 = vmatpush2.msra.mxu0 0.0
    %293 = vmatprep.subr.mxu0 0.0
    %294 = vmatpush2.msra.mxu0 0.0
    %295 = vmatprep.subr.mxu0 0.0
    %296 = vmatpush2.msra.mxu0 0.0
    %297 = vmatprep.subr.mxu0 0.0
    %298 = vmatpush2.msra.mxu0 0.0
    %299 = vmatprep.subr.mxu0 0.0
    %300 = vmatpush2.msra.mxu0 0.0
    %301 = vmatprep.subr.mxu0 0.0
    %302 = vmatpush2.msra.mxu0 0.0
    %303 = vmatprep.subr.mxu0 0.0
    %304 = vmatpush2.msra.mxu0 0.0
    %305 = vmatprep.subr.mxu0 0.0
    %306 = vmatpush2.msra.mxu0 0.0
    %307 = vmatprep.subr.mxu0 0.0
    %308 = vmatpush2.msra.mxu0 0.0
    %309 = vmatprep.subr.mxu0 0.0
    %310 = vmatpush2.msra.mxu0 0.0
    %311 = vmatprep.subr.mxu0 0.0
    %312 = vmatpush2.msra.mxu0 0.0
    %313 = vmatprep.mubr.f32.mxu0 0.0
    %314 = vmatmul.mubr.f32.gmra.mxu0 %v247
    %v315 = vpop.f32.mrf.mxu0
    %v316 = vadd.f32 0.0, %v315
    %v317 = vpop.f32.mrf.mxu0
    %v318 = vadd.f32 0.0, %v317
    %319 = vdwg.mxu0
    %v320 = vadd.f32 %v227, %v316
    %v321 = vadd.f32 %v228, %v318
    %v322 = vmul.f32 %v320, %v222
    %v323 = vmul.f32 %v321, %v223
    %v324 = vxor.u32 %v322, 2147483648
    %v325 = vxor.u32 %v323, 2147483648
    %v326 = vmul.f32 %v324, 1.442695
    %v327 = vpow.pop %v326
    %v328 = vmul.f32 %v325, 1.442695
    %v329 = vpow.pop %v328
    %v330 = vadd.f32 %v327, 1.0
    %v331 = vadd.f32 %v329, 1.0
    %v332 = vrcp.pop %v330
    %v333 = vmul.f32 1.0, %v332
    %v334 = vrcp.pop %v331
    %v335 = vmul.f32 1.0, %v334
    %v336 = vmul.f32 %v335, 2.0
    %v337 = vsub.f32 %v336, 1.0
    %v338 = vmul.f32 %v333, 0.0
    %v339 = vmul.f32 %v333, %v337
    %341 = vrot.lane.b32.xlu0 %v339, 64
    %v342 = vpop.permute.xlu0 %341
    %v344 = vadd.f32 %v338, %v342
    %v345 = vmul.f32 %v344, 2.0
    %v346 = vxor.u32 %v345, 2147483648
    %v347 = vmul.f32 %v346, 1.442695
    %v348 = vpow.pop %v347
    %v349 = vadd.f32 %v348, 1.0
    %v350 = vrcp.pop %v349
    %v351 = vmul.f32 1.0, %v350
    %v352 = vmul.f32 %v351, 2.0
    %v353 = vsub.f32 %v352, 1.0
    %v354 = vmul.f32 %v335, %v353
    %s355 = smul.u32 1, 2
    %s356 = smul.addr %s355, 8
    %s357 = scalar_lea.vmem [#allocation2], %s356
    %v358 = vld [vmem:[%s357] sm:$0xff]
    %v359 = vld [vmem:[%s357 + $0x8] sm:$0xff]
    %361 = vrot.lane.b32.xlu0 %v354, 64
    %v362 = vpop.permute.xlu0 %361
    %v363 = vsel %vm245, %v362, 0
    %365 = vmatprep.subr.mxu0 0.0
    %366 = vmatpush1.msra.mxu0 0.0
    %367 = vmatprep.subr.mxu0 0.0
    %368 = vmatpush1.msra.mxu0 0.0
    %369 = vmatprep.subr.mxu0 0.0
    %370 = vmatpush1.msra.mxu0 0.0
    %371 = vmatprep.subr.mxu0 0.0
    %372 = vmatpush1.msra.mxu0 0.0
    %373 = vmatprep.subr.mxu0 0.0
    %374 = vmatpush1.msra.mxu0 0.0
    %375 = vmatprep.subr.mxu0 0.0
    %376 = vmatpush1.msra.mxu0 0.0
    %377 = vmatprep.subr.mxu0 0.0
    %378 = vmatpush1.msra.mxu0 0.0
    %379 = vmatprep.subr.mxu0 0.0
    %380 = vmatpush1.msra.mxu0 0.0
    %381 = vmatprep.subr.mxu0 %v244
    %382 = vmatpush1.msra.mxu0 %v243
    %383 = vmatprep.subr.mxu0 %v242
    %384 = vmatpush1.msra.mxu0 %v241
    %385 = vmatprep.subr.mxu0 %v240
    %386 = vmatpush1.msra.mxu0 %v239
    %387 = vmatprep.subr.mxu0 %v238
    %388 = vmatpush1.msra.mxu0 %v237
    %389 = vmatprep.subr.mxu0 %v236
    %390 = vmatpush1.msra.mxu0 %v235
    %391 = vmatprep.subr.mxu0 %v234
    %392 = vmatpush1.msra.mxu0 %v233
    %393 = vmatprep.subr.mxu0 %v232
    %394 = vmatpush1.msra.mxu0 %v231
    %395 = vmatprep.subr.mxu0 %v230
    %396 = vmatpush1.msra.mxu0 %v229
    %397 = vmatprep.subr.mxu0 0.0
    %398 = vmatpush2.msra.mxu0 0.0
    %399 = vmatprep.subr.mxu0 0.0
    %400 = vmatpush2.msra.mxu0 0.0
    %401 = vmatprep.subr.mxu0 0.0
    %402 = vmatpush2.msra.mxu0 0.0
    %403 = vmatprep.subr.mxu0 0.0
    %404 = vmatpush2.msra.mxu0 0.0
    %405 = vmatprep.subr.mxu0 0.0
    %406 = vmatpush2.msra.mxu0 0.0
    %407 = vmatprep.subr.mxu0 0.0
    %408 = vmatpush2.msra.mxu0 0.0
    %409 = vmatprep.subr.mxu0 0.0
    %410 = vmatpush2.msra.mxu0 0.0
    %411 = vmatprep.subr.mxu0 0.0
    %412 = vmatpush2.msra.mxu0 0.0
    %413 = vmatprep.subr.mxu0 0.0
    %414 = vmatpush2.msra.mxu0 0.0
    %415 = vmatprep.subr.mxu0 0.0
    %416 = vmatpush2.msra.mxu0 0.0
    %417 = vmatprep.subr.mxu0 0.0
    %418 = vmatpush2.msra.mxu0 0.0
    %419 = vmatprep.subr.mxu0 0.0
    %420 = vmatpush2.msra.mxu0 0.0
    %421 = vmatprep.subr.mxu0 0.0
    %422 = vmatpush2.msra.mxu0 0.0
    %423 = vmatprep.subr.mxu0 0.0
    %424 = vmatpush2.msra.mxu0 0.0
    %425 = vmatprep.subr.mxu0 0.0
    %426 = vmatpush2.msra.mxu0 0.0
    %427 = vmatprep.subr.mxu0 0.0
    %428 = vmatpush2.msra.mxu0 0.0
    %429 = vmatprep.mubr.f32.mxu0 0.0
    %430 = vmatmul.mubr.f32.gmra.mxu0 %v363
    %v431 = vpop.f32.mrf.mxu0
    %v432 = vadd.f32 0.0, %v431
    %v433 = vpop.f32.mrf.mxu0
    %v434 = vadd.f32 0.0, %v433
    %435 = vdwg.mxu0
    %v436 = vadd.f32 %v358, %v432
    %v437 = vadd.f32 %v359, %v434
    %v438 = vmul.f32 %v436, %v222
    %v439 = vmul.f32 %v437, %v223
    %v440 = vxor.u32 %v438, 2147483648
    %v441 = vxor.u32 %v439, 2147483648
    %v442 = vmul.f32 %v440, 1.442695
    %v443 = vpow.pop %v442
    %v444 = vmul.f32 %v441, 1.442695
    %v445 = vpow.pop %v444
    %v446 = vadd.f32 %v443, 1.0
    %v447 = vadd.f32 %v445, 1.0
    %v448 = vrcp.pop %v446
    %v449 = vmul.f32 1.0, %v448
    %v450 = vrcp.pop %v447
    %v451 = vmul.f32 1.0, %v450
    %v452 = vmul.f32 %v451, 2.0
    %v453 = vsub.f32 %v452, 1.0
    %v454 = vmul.f32 %v449, %v344
    %v455 = vmul.f32 %v449, %v453
    %457 = vrot.lane.b32.xlu0 %v455, 64
    %v458 = vpop.permute.xlu0 %457
    %v460 = vadd.f32 %v454, %v458
    %v461 = vmul.f32 %v460, 2.0
    %v462 = vxor.u32 %v461, 2147483648
    %v463 = vmul.f32 %v462, 1.442695
    %v464 = vpow.pop %v463
    %v465 = vadd.f32 %v464, 1.0
    %v466 = vrcp.pop %v465
    %v467 = vmul.f32 1.0, %v466
    %v468 = vmul.f32 %v467, 2.0
    %v469 = vsub.f32 %v468, 1.0
    %v470 = vmul.f32 %v451, %v469
    %s471 = smul.u32 2, 2
    %s472 = smul.addr %s471, 8
    %s473 = scalar_lea.vmem [#allocation2], %s472
    %v474 = vld [vmem:[%s473] sm:$0xff]
    %v475 = vld [vmem:[%s473 + $0x8] sm:$0xff]
    %477 = vrot.lane.b32.xlu0 %v470, 64
    %v478 = vpop.permute.xlu0 %477
    %v479 = vsel %vm245, %v478, 0
    %481 = vmatprep.subr.mxu0 0.0
    %482 = vmatpush1.msra.mxu0 0.0
    %483 = vmatprep.subr.mxu0 0.0
    %484 = vmatpush1.msra.mxu0 0.0
    %485 = vmatprep.subr.mxu0 0.0
    %486 = vmatpush1.msra.mxu0 0.0
    %487 = vmatprep.subr.mxu0 0.0
    %488 = vmatpush1.msra.mxu0 0.0
    %489 = vmatprep.subr.mxu0 0.0
    %490 = vmatpush1.msra.mxu0 0.0
    %491 = vmatprep.subr.mxu0 0.0
    %492 = vmatpush1.msra.mxu0 0.0
    %493 = vmatprep.subr.mxu0 0.0
    %494 = vmatpush1.msra.mxu0 0.0
    %495 = vmatprep.subr.mxu0 0.0
    %496 = vmatpush1.msra.mxu0 0.0
    %497 = vmatprep.subr.mxu0 %v244
    %498 = vmatpush1.msra.mxu0 %v243
    %499 = vmatprep.subr.mxu0 %v242
    %500 = vmatpush1.msra.mxu0 %v241
    %501 = vmatprep.subr.mxu0 %v240
    %502 = vmatpush1.msra.mxu0 %v239
    %503 = vmatprep.subr.mxu0 %v238
    %504 = vmatpush1.msra.mxu0 %v237
    %505 = vmatprep.subr.mxu0 %v236
    %506 = vmatpush1.msra.mxu0 %v235
    %507 = vmatprep.subr.mxu0 %v234
    %508 = vmatpush1.msra.mxu0 %v233
    %509 = vmatprep.subr.mxu0 %v232
    %510 = vmatpush1.msra.mxu0 %v231
    %511 = vmatprep.subr.mxu0 %v230
    %512 = vmatpush1.msra.mxu0 %v229
    %513 = vmatprep.subr.mxu0 0.0
    %514 = vmatpush2.msra.mxu0 0.0
    %515 = vmatprep.subr.mxu0 0.0
    %516 = vmatpush2.msra.mxu0 0.0
    %517 = vmatprep.subr.mxu0 0.0
    %518 = vmatpush2.msra.mxu0 0.0
    %519 = vmatprep.subr.mxu0 0.0
    %520 = vmatpush2.msra.mxu0 0.0
    %521 = vmatprep.subr.mxu0 0.0
    %522 = vmatpush2.msra.mxu0 0.0
    %523 = vmatprep.subr.mxu0 0.0
    %524 = vmatpush2.msra.mxu0 0.0
    %525 = vmatprep.subr.mxu0 0.0
    %526 = vmatpush2.msra.mxu0 0.0
    %527 = vmatprep.subr.mxu0 0.0
    %528 = vmatpush2.msra.mxu0 0.0
    %529 = vmatprep.subr.mxu0 0.0
    %530 = vmatpush2.msra.mxu0 0.0
    %531 = vmatprep.subr.mxu0 0.0
    %532 = vmatpush2.msra.mxu0 0.0
    %533 = vmatprep.subr.mxu0 0.0
    %534 = vmatpush2.msra.mxu0 0.0
    %535 = vmatprep.subr.mxu0 0.0
    %536 = vmatpush2.msra.mxu0 0.0
    %537 = vmatprep.subr.mxu0 0.0
    %538 = vmatpush2.msra.mxu0 0.0
    %539 = vmatprep.subr.mxu0 0.0
    %540 = vmatpush2.msra.mxu0 0.0
    %541 = vmatprep.subr.mxu0 0.0
    %542 = vmatpush2.msra.mxu0 0.0
    %543 = vmatprep.subr.mxu0 0.0
    %544 = vmatpush2.msra.mxu0 0.0
    %545 = vmatprep.mubr.f32.mxu0 0.0
    %546 = vmatmul.mubr.f32.gmra.mxu0 %v479
    %v547 = vpop.f32.mrf.mxu0
    %v548 = vadd.f32 0.0, %v547
    %v549 = vpop.f32.mrf.mxu0
    %v550 = vadd.f32 0.0, %v549
    %551 = vdwg.mxu0
    %v552 = vadd.f32 %v474, %v548
    %v553 = vadd.f32 %v475, %v550
    %v554 = vmul.f32 %v552, %v222
    %v555 = vmul.f32 %v553, %v223
    %v556 = vxor.u32 %v554, 2147483648
    %v557 = vxor.u32 %v555, 2147483648
    %v558 = vmul.f32 %v556, 1.442695
    %v559 = vpow.pop %v558
    %v560 = vmul.f32 %v557, 1.442695
    %v561 = vpow.pop %v560
    %v562 = vadd.f32 %v559, 1.0
    %v563 = vadd.f32 %v561, 1.0
    %v564 = vrcp.pop %v562
    %v565 = vmul.f32 1.0, %v564
    %v566 = vrcp.pop %v563
    %v567 = vmul.f32 1.0, %v566
    %v568 = vmul.f32 %v567, 2.0
    %v569 = vsub.f32 %v568, 1.0
    %v570 = vmul.f32 %v565, %v460
    %v571 = vmul.f32 %v565, %v569
    %573 = vrot.lane.b32.xlu0 %v571, 64
    %v574 = vpop.permute.xlu0 %573
    %v576 = vadd.f32 %v570, %v574
    %v577 = vmul.f32 %v576, 2.0
    %v578 = vxor.u32 %v577, 2147483648
    %v579 = vmul.f32 %v578, 1.442695
    %v580 = vpow.pop %v579
    %v581 = vadd.f32 %v580, 1.0
    %v582 = vrcp.pop %v581
    %v583 = vmul.f32 1.0, %v582
    %v584 = vmul.f32 %v583, 2.0
    %v585 = vsub.f32 %v584, 1.0
    %v586 = vmul.f32 %v567, %v585
    %s587 = smul.u32 3, 2
    %s588 = smul.addr %s587, 8
    %s589 = scalar_lea.vmem [#allocation2], %s588
    %v590 = vld [vmem:[%s589] sm:$0xff]
    %v591 = vld [vmem:[%s589 + $0x8] sm:$0xff]
    %593 = vrot.lane.b32.xlu0 %v586, 64
    %v594 = vpop.permute.xlu0 %593
    %v595 = vsel %vm245, %v594, 0
    %597 = vmatprep.subr.mxu0 0.0
    %598 = vmatpush1.msra.mxu0 0.0
    %599 = vmatprep.subr.mxu0 0.0
    %600 = vmatpush1.msra.mxu0 0.0
    %601 = vmatprep.subr.mxu0 0.0
    %602 = vmatpush1.msra.mxu0 0.0
    %603 = vmatprep.subr.mxu0 0.0
    %604 = vmatpush1.msra.mxu0 0.0
    %605 = vmatprep.subr.mxu0 0.0
    %606 = vmatpush1.msra.mxu0 0.0
    %607 = vmatprep.subr.mxu0 0.0
    %608 = vmatpush1.msra.mxu0 0.0
    %609 = vmatprep.subr.mxu0 0.0
    %610 = vmatpush1.msra.mxu0 0.0
    %611 = vmatprep.subr.mxu0 0.0
    %612 = vmatpush1.msra.mxu0 0.0
    %613 = vmatprep.subr.mxu0 %v244
    %614 = vmatpush1.msra.mxu0 %v243
    %615 = vmatprep.subr.mxu0 %v242
    %616 = vmatpush1.msra.mxu0 %v241
    %617 = vmatprep.subr.mxu0 %v240
    %618 = vmatpush1.msra.mxu0 %v239
    %619 = vmatprep.subr.mxu0 %v238
    %620 = vmatpush1.msra.mxu0 %v237
    %621 = vmatprep.subr.mxu0 %v236
    %622 = vmatpush1.msra.mxu0 %v235
    %623 = vmatprep.subr.mxu0 %v234
    %624 = vmatpush1.msra.mxu0 %v233
    %625 = vmatprep.subr.mxu0 %v232
    %626 = vmatpush1.msra.mxu0 %v231
    %627 = vmatprep.subr.mxu0 %v230
    %628 = vmatpush1.msra.mxu0 %v229
    %629 = vmatprep.subr.mxu0 0.0
    %630 = vmatpush2.msra.mxu0 0.0
    %631 = vmatprep.subr.mxu0 0.0
    %632 = vmatpush2.msra.mxu0 0.0
    %633 = vmatprep.subr.mxu0 0.0
    %634 = vmatpush2.msra.mxu0 0.0
    %635 = vmatprep.subr.mxu0 0.0
    %636 = vmatpush2.msra.mxu0 0.0
    %637 = vmatprep.subr.mxu0 0.0
    %638 = vmatpush2.msra.mxu0 0.0
    %639 = vmatprep.subr.mxu0 0.0
    %640 = vmatpush2.msra.mxu0 0.0
    %641 = vmatprep.subr.mxu0 0.0
    %642 = vmatpush2.msra.mxu0 0.0
    %643 = vmatprep.subr.mxu0 0.0
    %644 = vmatpush2.msra.mxu0 0.0
    %645 = vmatprep.subr.mxu0 0.0
    %646 = vmatpush2.msra.mxu0 0.0
    %647 = vmatprep.subr.mxu0 0.0
    %648 = vmatpush2.msra.mxu0 0.0
    %649 = vmatprep.subr.mxu0 0.0
    %650 = vmatpush2.msra.mxu0 0.0
    %651 = vmatprep.subr.mxu0 0.0
    %652 = vmatpush2.msra.mxu0 0.0
    %653 = vmatprep.subr.mxu0 0.0
    %654 = vmatpush2.msra.mxu0 0.0
    %655 = vmatprep.subr.mxu0 0.0
    %656 = vmatpush2.msra.mxu0 0.0
    %657 = vmatprep.subr.mxu0 0.0
    %658 = vmatpush2.msra.mxu0 0.0
    %659 = vmatprep.subr.mxu0 0.0
    %660 = vmatpush2.msra.mxu0 0.0
    %661 = vmatprep.mubr.f32.mxu0 0.0
    %662 = vmatmul.mubr.f32.gmra.mxu0 %v595
    %v663 = vpop.f32.mrf.mxu0
    %v664 = vadd.f32 0.0, %v663
    %v665 = vpop.f32.mrf.mxu0
    %v666 = vadd.f32 0.0, %v665
    %667 = vdwg.mxu0
    %v668 = vadd.f32 %v590, %v664
    %v669 = vadd.f32 %v591, %v666
    %v670 = vmul.f32 %v668, %v222
    %v671 = vmul.f32 %v669, %v223
    %v672 = vxor.u32 %v670, 2147483648
    %v673 = vxor.u32 %v671, 2147483648
    %v674 = vmul.f32 %v672, 1.442695
    %v675 = vpow.pop %v674
    %v676 = vmul.f32 %v673, 1.442695
    %v677 = vpow.pop %v676
    %v678 = vadd.f32 %v675, 1.0
    %v679 = vadd.f32 %v677, 1.0
    %v680 = vrcp.pop %v678
    %v681 = vmul.f32 1.0, %v680
    %v682 = vrcp.pop %v679
    %v683 = vmul.f32 1.0, %v682
    %v684 = vmul.f32 %v683, 2.0
    %v685 = vsub.f32 %v684, 1.0
    %v686 = vmul.f32 %v681, %v576
    %v687 = vmul.f32 %v681, %v685
    %689 = vrot.lane.b32.xlu0 %v687, 64
    %v690 = vpop.permute.xlu0 %689
    %v692 = vadd.f32 %v686, %v690
    %v693 = vmul.f32 %v692, 2.0
    %v694 = vxor.u32 %v693, 2147483648
    %v695 = vmul.f32 %v694, 1.442695
    %v696 = vpow.pop %v695
    %v697 = vadd.f32 %v696, 1.0
    %v698 = vrcp.pop %v697
    %v699 = vmul.f32 1.0, %v698
    %v700 = vmul.f32 %v699, 2.0
    %v701 = vsub.f32 %v700, 1.0
    %v702 = vmul.f32 %v683, %v701
    %s703 = smul.u32 4, 2
    %s704 = smul.addr %s703, 8
    %s705 = scalar_lea.vmem [#allocation2], %s704
    %v706 = vld [vmem:[%s705] sm:$0xff]
    %v707 = vld [vmem:[%s705 + $0x8] sm:$0xff]
    %709 = vrot.lane.b32.xlu0 %v702, 64
    %v710 = vpop.permute.xlu0 %709
    %v711 = vsel %vm245, %v710, 0
    %713 = vmatprep.subr.mxu0 0.0
    %714 = vmatpush1.msra.mxu0 0.0
    %715 = vmatprep.subr.mxu0 0.0
    %716 = vmatpush1.msra.mxu0 0.0
    %717 = vmatprep.subr.mxu0 0.0
    %718 = vmatpush1.msra.mxu0 0.0
    %719 = vmatprep.subr.mxu0 0.0
    %720 = vmatpush1.msra.mxu0 0.0
    %721 = vmatprep.subr.mxu0 0.0
    %722 = vmatpush1.msra.mxu0 0.0
    %723 = vmatprep.subr.mxu0 0.0
    %724 = vmatpush1.msra.mxu0 0.0
    %725 = vmatprep.subr.mxu0 0.0
    %726 = vmatpush1.msra.mxu0 0.0
    %727 = vmatprep.subr.mxu0 0.0
    %728 = vmatpush1.msra.mxu0 0.0
    %729 = vmatprep.subr.mxu0 %v244
    %730 = vmatpush1.msra.mxu0 %v243
    %731 = vmatprep.subr.mxu0 %v242
    %732 = vmatpush1.msra.mxu0 %v241
    %733 = vmatprep.subr.mxu0 %v240
    %734 = vmatpush1.msra.mxu0 %v239
    %735 = vmatprep.subr.mxu0 %v238
    %736 = vmatpush1.msra.mxu0 %v237
    %737 = vmatprep.subr.mxu0 %v236
    %738 = vmatpush1.msra.mxu0 %v235
    %739 = vmatprep.subr.mxu0 %v234
    %740 = vmatpush1.msra.mxu0 %v233
    %741 = vmatprep.subr.mxu0 %v232
    %742 = vmatpush1.msra.mxu0 %v231
    %743 = vmatprep.subr.mxu0 %v230
    %744 = vmatpush1.msra.mxu0 %v229
    %745 = vmatprep.subr.mxu0 0.0
    %746 = vmatpush2.msra.mxu0 0.0
    %747 = vmatprep.subr.mxu0 0.0
    %748 = vmatpush2.msra.mxu0 0.0
    %749 = vmatprep.subr.mxu0 0.0
    %750 = vmatpush2.msra.mxu0 0.0
    %751 = vmatprep.subr.mxu0 0.0
    %752 = vmatpush2.msra.mxu0 0.0
    %753 = vmatprep.subr.mxu0 0.0
    %754 = vmatpush2.msra.mxu0 0.0
    %755 = vmatprep.subr.mxu0 0.0
    %756 = vmatpush2.msra.mxu0 0.0
    %757 = vmatprep.subr.mxu0 0.0
    %758 = vmatpush2.msra.mxu0 0.0
    %759 = vmatprep.subr.mxu0 0.0
    %760 = vmatpush2.msra.mxu0 0.0
    %761 = vmatprep.subr.mxu0 0.0
    %762 = vmatpush2.msra.mxu0 0.0
    %763 = vmatprep.subr.mxu0 0.0
    %764 = vmatpush2.msra.mxu0 0.0
    %765 = vmatprep.subr.mxu0 0.0
    %766 = vmatpush2.msra.mxu0 0.0
    %767 = vmatprep.subr.mxu0 0.0
    %768 = vmatpush2.msra.mxu0 0.0
    %769 = vmatprep.subr.mxu0 0.0
    %770 = vmatpush2.msra.mxu0 0.0
    %771 = vmatprep.subr.mxu0 0.0
    %772 = vmatpush2.msra.mxu0 0.0
    %773 = vmatprep.subr.mxu0 0.0
    %774 = vmatpush2.msra.mxu0 0.0
    %775 = vmatprep.subr.mxu0 0.0
    %776 = vmatpush2.msra.mxu0 0.0
    %777 = vmatprep.mubr.f32.mxu0 0.0
    %778 = vmatmul.mubr.f32.gmra.mxu0 %v711
    %v779 = vpop.f32.mrf.mxu0
    %v780 = vadd.f32 0.0, %v779
    %v781 = vpop.f32.mrf.mxu0
    %v782 = vadd.f32 0.0, %v781
    %783 = vdwg.mxu0
    %v784 = vadd.f32 %v706, %v780
    %v785 = vadd.f32 %v707, %v782
    %v786 = vmul.f32 %v784, %v222
    %v787 = vmul.f32 %v785, %v223
    %v788 = vxor.u32 %v786, 2147483648
    %v789 = vxor.u32 %v787, 2147483648
    %v790 = vmul.f32 %v788, 1.442695
    %v791 = vpow.pop %v790
    %v792 = vmul.f32 %v789, 1.442695
    %v793 = vpow.pop %v792
    %v794 = vadd.f32 %v791, 1.0
    %v795 = vadd.f32 %v793, 1.0
    %v796 = vrcp.pop %v794
    %v797 = vmul.f32 1.0, %v796
    %v798 = vrcp.pop %v795
    %v799 = vmul.f32 1.0, %v798
    %v800 = vmul.f32 %v799, 2.0
    %v801 = vsub.f32 %v800, 1.0
    %v802 = vmul.f32 %v797, %v692
    %v803 = vmul.f32 %v797, %v801
    %805 = vrot.lane.b32.xlu0 %v803, 64
    %v806 = vpop.permute.xlu0 %805
    %v808 = vadd.f32 %v802, %v806
    %v809 = vmul.f32 %v808, 2.0
    %v810 = vxor.u32 %v809, 2147483648
    %v811 = vmul.f32 %v810, 1.442695
    %v812 = vpow.pop %v811
    %v813 = vadd.f32 %v812, 1.0
    %v814 = vrcp.pop %v813
    %v815 = vmul.f32 1.0, %v814
    %v816 = vmul.f32 %v815, 2.0
    %v817 = vsub.f32 %v816, 1.0
    %v818 = vmul.f32 %v799, %v817
    %s819 = smul.u32 5, 2
    %s820 = smul.addr %s819, 8
    %s821 = scalar_lea.vmem [#allocation2], %s820
    %v822 = vld [vmem:[%s821] sm:$0xff]
    %v823 = vld [vmem:[%s821 + $0x8] sm:$0xff]
    %825 = vrot.lane.b32.xlu0 %v818, 64
    %v826 = vpop.permute.xlu0 %825
    %v827 = vsel %vm245, %v826, 0
    %829 = vmatprep.subr.mxu0 0.0
    %830 = vmatpush1.msra.mxu0 0.0
    %831 = vmatprep.subr.mxu0 0.0
    %832 = vmatpush1.msra.mxu0 0.0
    %833 = vmatprep.subr.mxu0 0.0
    %834 = vmatpush1.msra.mxu0 0.0
    %835 = vmatprep.subr.mxu0 0.0
    %836 = vmatpush1.msra.mxu0 0.0
    %837 = vmatprep.subr.mxu0 0.0
    %838 = vmatpush1.msra.mxu0 0.0
    %839 = vmatprep.subr.mxu0 0.0
    %840 = vmatpush1.msra.mxu0 0.0
    %841 = vmatprep.subr.mxu0 0.0
    %842 = vmatpush1.msra.mxu0 0.0
    %843 = vmatprep.subr.mxu0 0.0
    %844 = vmatpush1.msra.mxu0 0.0
    %845 = vmatprep.subr.mxu0 %v244
    %846 = vmatpush1.msra.mxu0 %v243
    %847 = vmatprep.subr.mxu0 %v242
    %848 = vmatpush1.msra.mxu0 %v241
    %849 = vmatprep.subr.mxu0 %v240
    %850 = vmatpush1.msra.mxu0 %v239
    %851 = vmatprep.subr.mxu0 %v238
    %852 = vmatpush1.msra.mxu0 %v237
    %853 = vmatprep.subr.mxu0 %v236
    %854 = vmatpush1.msra.mxu0 %v235
    %855 = vmatprep.subr.mxu0 %v234
    %856 = vmatpush1.msra.mxu0 %v233
    %857 = vmatprep.subr.mxu0 %v232
    %858 = vmatpush1.msra.mxu0 %v231
    %859 = vmatprep.subr.mxu0 %v230
    %860 = vmatpush1.msra.mxu0 %v229
    %861 = vmatprep.subr.mxu0 0.0
    %862 = vmatpush2.msra.mxu0 0.0
    %863 = vmatprep.subr.mxu0 0.0
    %864 = vmatpush2.msra.mxu0 0.0
    %865 = vmatprep.subr.mxu0 0.0
    %866 = vmatpush2.msra.mxu0 0.0
    %867 = vmatprep.subr.mxu0 0.0
    %868 = vmatpush2.msra.mxu0 0.0
    %869 = vmatprep.subr.mxu0 0.0
    %870 = vmatpush2.msra.mxu0 0.0
    %871 = vmatprep.subr.mxu0 0.0
    %872 = vmatpush2.msra.mxu0 0.0
    %873 = vmatprep.subr.mxu0 0.0
    %874 = vmatpush2.msra.mxu0 0.0
    %875 = vmatprep.subr.mxu0 0.0
    %876 = vmatpush2.msra.mxu0 0.0
    %877 = vmatprep.subr.mxu0 0.0
    %878 = vmatpush2.msra.mxu0 0.0
    %879 = vmatprep.subr.mxu0 0.0
    %880 = vmatpush2.msra.mxu0 0.0
    %881 = vmatprep.subr.mxu0 0.0
    %882 = vmatpush2.msra.mxu0 0.0
    %883 = vmatprep.subr.mxu0 0.0
    %884 = vmatpush2.msra.mxu0 0.0
    %885 = vmatprep.subr.mxu0 0.0
    %886 = vmatpush2.msra.mxu0 0.0
    %887 = vmatprep.subr.mxu0 0.0
    %888 = vmatpush2.msra.mxu0 0.0
    %889 = vmatprep.subr.mxu0 0.0
    %890 = vmatpush2.msra.mxu0 0.0
    %891 = vmatprep.subr.mxu0 0.0
    %892 = vmatpush2.msra.mxu0 0.0
    %893 = vmatprep.mubr.f32.mxu0 0.0
    %894 = vmatmul.mubr.f32.gmra.mxu0 %v827
    %v895 = vpop.f32.mrf.mxu0
    %v896 = vadd.f32 0.0, %v895
    %v897 = vpop.f32.mrf.mxu0
    %v898 = vadd.f32 0.0, %v897
    %899 = vdwg.mxu0
    %v900 = vadd.f32 %v822, %v896
    %v901 = vadd.f32 %v823, %v898
    %v902 = vmul.f32 %v900, %v222
    %v903 = vmul.f32 %v901, %v223
    %v904 = vxor.u32 %v902, 2147483648
    %v905 = vxor.u32 %v903, 2147483648
    %v906 = vmul.f32 %v904, 1.442695
    %v907 = vpow.pop %v906
    %v908 = vmul.f32 %v905, 1.442695
    %v909 = vpow.pop %v908
    %v910 = vadd.f32 %v907, 1.0
    %v911 = vadd.f32 %v909, 1.0
    %v912 = vrcp.pop %v910
    %v913 = vmul.f32 1.0, %v912
    %v914 = vrcp.pop %v911
    %v915 = vmul.f32 1.0, %v914
    %v916 = vmul.f32 %v915, 2.0
    %v917 = vsub.f32 %v916, 1.0
    %v918 = vmul.f32 %v913, %v808
    %v919 = vmul.f32 %v913, %v917
    %921 = vrot.lane.b32.xlu0 %v919, 64
    %v922 = vpop.permute.xlu0 %921
    %v924 = vadd.f32 %v918, %v922
    %v925 = vmul.f32 %v924, 2.0
    %v926 = vxor.u32 %v925, 2147483648
    %v927 = vmul.f32 %v926, 1.442695
    %v928 = vpow.pop %v927
    %v929 = vadd.f32 %v928, 1.0
    %v930 = vrcp.pop %v929
    %v931 = vmul.f32 1.0, %v930
    %v932 = vmul.f32 %v931, 2.0
    %v933 = vsub.f32 %v932, 1.0
    %v934 = vmul.f32 %v915, %v933
    %s935 = smul.u32 6, 2
    %s936 = smul.addr %s935, 8
    %s937 = scalar_lea.vmem [#allocation2], %s936
    %v938 = vld [vmem:[%s937] sm:$0xff]
    %v939 = vld [vmem:[%s937 + $0x8] sm:$0xff]
    %941 = vrot.lane.b32.xlu0 %v934, 64
    %v942 = vpop.permute.xlu0 %941
    %v943 = vsel %vm245, %v942, 0
    %945 = vmatprep.subr.mxu0 0.0
    %946 = vmatpush1.msra.mxu0 0.0
    %947 = vmatprep.subr.mxu0 0.0
    %948 = vmatpush1.msra.mxu0 0.0
    %949 = vmatprep.subr.mxu0 0.0
    %950 = vmatpush1.msra.mxu0 0.0
    %951 = vmatprep.subr.mxu0 0.0
    %952 = vmatpush1.msra.mxu0 0.0
    %953 = vmatprep.subr.mxu0 0.0
    %954 = vmatpush1.msra.mxu0 0.0
    %955 = vmatprep.subr.mxu0 0.0
    %956 = vmatpush1.msra.mxu0 0.0
    %957 = vmatprep.subr.mxu0 0.0
    %958 = vmatpush1.msra.mxu0 0.0
    %959 = vmatprep.subr.mxu0 0.0
    %960 = vmatpush1.msra.mxu0 0.0
    %961 = vmatprep.subr.mxu0 %v244
    %962 = vmatpush1.msra.mxu0 %v243
    %963 = vmatprep.subr.mxu0 %v242
    %964 = vmatpush1.msra.mxu0 %v241
    %965 = vmatprep.subr.mxu0 %v240
    %966 = vmatpush1.msra.mxu0 %v239
    %967 = vmatprep.subr.mxu0 %v238
    %968 = vmatpush1.msra.mxu0 %v237
    %969 = vmatprep.subr.mxu0 %v236
    %970 = vmatpush1.msra.mxu0 %v235
    %971 = vmatprep.subr.mxu0 %v234
    %972 = vmatpush1.msra.mxu0 %v233
    %973 = vmatprep.subr.mxu0 %v232
    %974 = vmatpush1.msra.mxu0 %v231
    %975 = vmatprep.subr.mxu0 %v230
    %976 = vmatpush1.msra.mxu0 %v229
    %977 = vmatprep.subr.mxu0 0.0
    %978 = vmatpush2.msra.mxu0 0.0
    %979 = vmatprep.subr.mxu0 0.0
    %980 = vmatpush2.msra.mxu0 0.0
    %981 = vmatprep.subr.mxu0 0.0
    %982 = vmatpush2.msra.mxu0 0.0
    %983 = vmatprep.subr.mxu0 0.0
    %984 = vmatpush2.msra.mxu0 0.0
    %985 = vmatprep.subr.mxu0 0.0
    %986 = vmatpush2.msra.mxu0 0.0
    %987 = vmatprep.subr.mxu0 0.0
    %988 = vmatpush2.msra.mxu0 0.0
    %989 = vmatprep.subr.mxu0 0.0
    %990 = vmatpush2.msra.mxu0 0.0
    %991 = vmatprep.subr.mxu0 0.0
    %992 = vmatpush2.msra.mxu0 0.0
    %993 = vmatprep.subr.mxu0 0.0
    %994 = vmatpush2.msra.mxu0 0.0
    %995 = vmatprep.subr.mxu0 0.0
    %996 = vmatpush2.msra.mxu0 0.0
    %997 = vmatprep.subr.mxu0 0.0
    %998 = vmatpush2.msra.mxu0 0.0
    %999 = vmatprep.subr.mxu0 0.0
    %1000 = vmatpush2.msra.mxu0 0.0
    %1001 = vmatprep.subr.mxu0 0.0
    %1002 = vmatpush2.msra.mxu0 0.0
    %1003 = vmatprep.subr.mxu0 0.0
    %1004 = vmatpush2.msra.mxu0 0.0
    %1005 = vmatprep.subr.mxu0 0.0
    %1006 = vmatpush2.msra.mxu0 0.0
    %1007 = vmatprep.subr.mxu0 0.0
    %1008 = vmatpush2.msra.mxu0 0.0
    %1009 = vmatprep.mubr.f32.mxu0 0.0
    %1010 = vmatmul.mubr.f32.gmra.mxu0 %v943
    %v1011 = vpop.f32.mrf.mxu0
    %v1012 = vadd.f32 0.0, %v1011
    %v1013 = vpop.f32.mrf.mxu0
    %v1014 = vadd.f32 0.0, %v1013
    %1015 = vdwg.mxu0
    %v1016 = vadd.f32 %v938, %v1012
    %v1017 = vadd.f32 %v939, %v1014
    %v1018 = vmul.f32 %v1016, %v222
    %v1019 = vmul.f32 %v1017, %v223
    %v1020 = vxor.u32 %v1018, 2147483648
    %v1021 = vxor.u32 %v1019, 2147483648
    %v1022 = vmul.f32 %v1020, 1.442695
    %v1023 = vpow.pop %v1022
    %v1024 = vmul.f32 %v1021, 1.442695
    %v1025 = vpow.pop %v1024
    %v1026 = vadd.f32 %v1023, 1.0
    %v1027 = vadd.f32 %v1025, 1.0
    %v1028 = vrcp.pop %v1026
    %v1029 = vmul.f32 1.0, %v1028
    %v1030 = vrcp.pop %v1027
    %v1031 = vmul.f32 1.0, %v1030
    %v1032 = vmul.f32 %v1031, 2.0
    %v1033 = vsub.f32 %v1032, 1.0
    %v1034 = vmul.f32 %v1029, %v924
    %v1035 = vmul.f32 %v1029, %v1033
    %1037 = vrot.lane.b32.xlu0 %v1035, 64
    %v1038 = vpop.permute.xlu0 %1037
    %v1040 = vadd.f32 %v1034, %v1038
    %v1041 = vmul.f32 %v1040, 2.0
    %v1042 = vxor.u32 %v1041, 2147483648
    %v1043 = vmul.f32 %v1042, 1.442695
    %v1044 = vpow.pop %v1043
    %v1045 = vadd.f32 %v1044, 1.0
    %v1046 = vrcp.pop %v1045
    %v1047 = vmul.f32 1.0, %v1046
    %v1048 = vmul.f32 %v1047, 2.0
    %v1049 = vsub.f32 %v1048, 1.0
    %v1050 = vmul.f32 %v1031, %v1049
    %s1051 = smul.u32 7, 2
    %s1052 = smul.addr %s1051, 8
    %s1053 = scalar_lea.vmem [#allocation2], %s1052
    %v1054 = vld [vmem:[%s1053] sm:$0xff]
    %v1055 = vld [vmem:[%s1053 + $0x8] sm:$0xff]
    %1057 = vrot.lane.b32.xlu0 %v1050, 64
    %v1058 = vpop.permute.xlu0 %1057
    %v1059 = vsel %vm245, %v1058, 0
    %1061 = vmatprep.subr.mxu0 0.0
    %1062 = vmatpush1.msra.mxu0 0.0
    %1063 = vmatprep.subr.mxu0 0.0
    %1064 = vmatpush1.msra.mxu0 0.0
    %1065 = vmatprep.subr.mxu0 0.0
    %1066 = vmatpush1.msra.mxu0 0.0
    %1067 = vmatprep.subr.mxu0 0.0
    %1068 = vmatpush1.msra.mxu0 0.0
    %1069 = vmatprep.subr.mxu0 0.0
    %1070 = vmatpush1.msra.mxu0 0.0
    %1071 = vmatprep.subr.mxu0 0.0
    %1072 = vmatpush1.msra.mxu0 0.0
    %1073 = vmatprep.subr.mxu0 0.0
    %1074 = vmatpush1.msra.mxu0 0.0
    %1075 = vmatprep.subr.mxu0 0.0
    %1076 = vmatpush1.msra.mxu0 0.0
    %1077 = vmatprep.subr.mxu0 %v244
    %1078 = vmatpush1.msra.mxu0 %v243
    %1079 = vmatprep.subr.mxu0 %v242
    %1080 = vmatpush1.msra.mxu0 %v241
    %1081 = vmatprep.subr.mxu0 %v240
    %1082 = vmatpush1.msra.mxu0 %v239
    %1083 = vmatprep.subr.mxu0 %v238
    %1084 = vmatpush1.msra.mxu0 %v237
    %1085 = vmatprep.subr.mxu0 %v236
    %1086 = vmatpush1.msra.mxu0 %v235
    %1087 = vmatprep.subr.mxu0 %v234
    %1088 = vmatpush1.msra.mxu0 %v233
    %1089 = vmatprep.subr.mxu0 %v232
    %1090 = vmatpush1.msra.mxu0 %v231
    %1091 = vmatprep.subr.mxu0 %v230
    %1092 = vmatpush1.msra.mxu0 %v229
    %1093 = vmatprep.subr.mxu0 0.0
    %1094 = vmatpush2.msra.mxu0 0.0
    %1095 = vmatprep.subr.mxu0 0.0
    %1096 = vmatpush2.msra.mxu0 0.0
    %1097 = vmatprep.subr.mxu0 0.0
    %1098 = vmatpush2.msra.mxu0 0.0
    %1099 = vmatprep.subr.mxu0 0.0
    %1100 = vmatpush2.msra.mxu0 0.0
    %1101 = vmatprep.subr.mxu0 0.0
    %1102 = vmatpush2.msra.mxu0 0.0
    %1103 = vmatprep.subr.mxu0 0.0
    %1104 = vmatpush2.msra.mxu0 0.0
    %1105 = vmatprep.subr.mxu0 0.0
    %1106 = vmatpush2.msra.mxu0 0.0
    %1107 = vmatprep.subr.mxu0 0.0
    %1108 = vmatpush2.msra.mxu0 0.0
    %1109 = vmatprep.subr.mxu0 0.0
    %1110 = vmatpush2.msra.mxu0 0.0
    %1111 = vmatprep.subr.mxu0 0.0
    %1112 = vmatpush2.msra.mxu0 0.0
    %1113 = vmatprep.subr.mxu0 0.0
    %1114 = vmatpush2.msra.mxu0 0.0
    %1115 = vmatprep.subr.mxu0 0.0
    %1116 = vmatpush2.msra.mxu0 0.0
    %1117 = vmatprep.subr.mxu0 0.0
    %1118 = vmatpush2.msra.mxu0 0.0
    %1119 = vmatprep.subr.mxu0 0.0
    %1120 = vmatpush2.msra.mxu0 0.0
    %1121 = vmatprep.subr.mxu0 0.0
    %1122 = vmatpush2.msra.mxu0 0.0
    %1123 = vmatprep.subr.mxu0 0.0
    %1124 = vmatpush2.msra.mxu0 0.0
    %1125 = vmatprep.mubr.f32.mxu0 0.0
    %1126 = vmatmul.mubr.f32.gmra.mxu0 %v1059
    %v1127 = vpop.f32.mrf.mxu0
    %v1128 = vadd.f32 0.0, %v1127
    %v1129 = vpop.f32.mrf.mxu0
    %v1130 = vadd.f32 0.0, %v1129
    %1131 = vdwg.mxu0
    %v1132 = vadd.f32 %v1054, %v1128
    %v1133 = vadd.f32 %v1055, %v1130
    %v1134 = vmul.f32 %v1132, %v222
    %v1135 = vmul.f32 %v1133, %v223
    %v1136 = vxor.u32 %v1134, 2147483648
    %v1137 = vxor.u32 %v1135, 2147483648
    %v1138 = vmul.f32 %v1136, 1.442695
    %v1139 = vpow.pop %v1138
    %v1140 = vmul.f32 %v1137, 1.442695
    %v1141 = vpow.pop %v1140
    %v1142 = vadd.f32 %v1139, 1.0
    %v1143 = vadd.f32 %v1141, 1.0
    %v1144 = vrcp.pop %v1142
    %v1145 = vmul.f32 1.0, %v1144
    %v1146 = vrcp.pop %v1143
    %v1147 = vmul.f32 1.0, %v1146
    %v1148 = vmul.f32 %v1147, 2.0
    %v1149 = vsub.f32 %v1148, 1.0
    %v1150 = vmul.f32 %v1145, %v1040
    %v1151 = vmul.f32 %v1145, %v1149
    %1153 = vrot.lane.b32.xlu0 %v1151, 64
    %v1154 = vpop.permute.xlu0 %1153
    %v1156 = vadd.f32 %v1150, %v1154
    %v1157 = vmul.f32 %v1156, 2.0
    %v1158 = vxor.u32 %v1157, 2147483648
    %v1159 = vmul.f32 %v1158, 1.442695
    %v1160 = vpow.pop %v1159
    %v1161 = vadd.f32 %v1160, 1.0
    %v1162 = vrcp.pop %v1161
    %v1163 = vmul.f32 1.0, %v1162
    %v1164 = vmul.f32 %v1163, 2.0
    %v1165 = vsub.f32 %v1164, 1.0
    %v1166 = vmul.f32 %v1147, %v1165
    %v1167 = vld [vmem:[%s4] sm:$0xff]
    %v1168 = vld [vmem:[%s4 + $0x8] sm:$0xff]
    %v1169 = vld [vmem:[%s4 + $0x10] sm:$0xff]
    %v1170 = vld [vmem:[%s4 + $0x18] sm:$0xff]
    %v1171 = vld [vmem:[%s4 + $0x20] sm:$0xff]
    %v1172 = vld [vmem:[%s4 + $0x28] sm:$0xff]
    %v1173 = vld [vmem:[%s4 + $0x30] sm:$0xff]
    %v1174 = vld [vmem:[%s4 + $0x38] sm:$0xff]
    %v1175 = vld [vmem:[%s5] sm:$0x1]
    %v1177 = vlaneseq
    %v1178 = vshrl.u32 %v1177, 7
    %v1179 = vsub.s32 0, %v1178
    %v1180 = vrot.slane %v1175, %v1179
    %1183 = vrot.lane.b32.xlu0 %v1166, 64
    %v1184 = vpop.permute.xlu0 %1183
    %v1185 = vsel %vm245, %v1184, 0
    %1187 = vmatprep.subr.mxu0 0.0
    %1188 = vmatpush1.msra.mxu0 0.0
    %1189 = vmatprep.subr.mxu0 0.0
    %1190 = vmatpush1.msra.mxu0 0.0
    %1191 = vmatprep.subr.mxu0 0.0
    %1192 = vmatpush1.msra.mxu0 0.0
    %1193 = vmatprep.subr.mxu0 0.0
    %1194 = vmatpush1.msra.mxu0 0.0
    %1195 = vmatprep.subr.mxu0 0.0
    %1196 = vmatpush1.msra.mxu0 0.0
    %1197 = vmatprep.subr.mxu0 0.0
    %1198 = vmatpush1.msra.mxu0 0.0
    %1199 = vmatprep.subr.mxu0 0.0
    %1200 = vmatpush1.msra.mxu0 0.0
    %1201 = vmatprep.subr.mxu0 0.0
    %1202 = vmatpush1.msra.mxu0 0.0
    %1203 = vmatprep.subr.mxu0 0.0
    %1204 = vmatpush1.msra.mxu0 %v1174
    %1205 = vmatprep.subr.mxu0 0.0
    %1206 = vmatpush1.msra.mxu0 %v1173
    %1207 = vmatprep.subr.mxu0 0.0
    %1208 = vmatpush1.msra.mxu0 %v1172
    %1209 = vmatprep.subr.mxu0 0.0
    %1210 = vmatpush1.msra.mxu0 %v1171
    %1211 = vmatprep.subr.mxu0 0.0
    %1212 = vmatpush1.msra.mxu0 %v1170
    %1213 = vmatprep.subr.mxu0 0.0
    %1214 = vmatpush1.msra.mxu0 %v1169
    %1215 = vmatprep.subr.mxu0 0.0
    %1216 = vmatpush1.msra.mxu0 %v1168
    %1217 = vmatprep.subr.mxu0 0.0
    %1218 = vmatpush1.msra.mxu0 %v1167
    %1219 = vmatprep.subr.mxu0 0.0
    %1220 = vmatpush2.msra.mxu0 0.0
    %1221 = vmatprep.subr.mxu0 0.0
    %1222 = vmatpush2.msra.mxu0 0.0
    %1223 = vmatprep.subr.mxu0 0.0
    %1224 = vmatpush2.msra.mxu0 0.0
    %1225 = vmatprep.subr.mxu0 0.0
    %1226 = vmatpush2.msra.mxu0 0.0
    %1227 = vmatprep.subr.mxu0 0.0
    %1228 = vmatpush2.msra.mxu0 0.0
    %1229 = vmatprep.subr.mxu0 0.0
    %1230 = vmatpush2.msra.mxu0 0.0
    %1231 = vmatprep.subr.mxu0 0.0
    %1232 = vmatpush2.msra.mxu0 0.0
    %1233 = vmatprep.subr.mxu0 0.0
    %1234 = vmatpush2.msra.mxu0 0.0
    %1235 = vmatprep.subr.mxu0 0.0
    %1236 = vmatpush2.msra.mxu0 0.0
    %1237 = vmatprep.subr.mxu0 0.0
    %1238 = vmatpush2.msra.mxu0 0.0
    %1239 = vmatprep.subr.mxu0 0.0
    %1240 = vmatpush2.msra.mxu0 0.0
    %1241 = vmatprep.subr.mxu0 0.0
    %1242 = vmatpush2.msra.mxu0 0.0
    %1243 = vmatprep.subr.mxu0 0.0
    %1244 = vmatpush2.msra.mxu0 0.0
    %1245 = vmatprep.subr.mxu0 0.0
    %1246 = vmatpush2.msra.mxu0 0.0
    %1247 = vmatprep.subr.mxu0 0.0
    %1248 = vmatpush2.msra.mxu0 0.0
    %1249 = vmatprep.subr.mxu0 0.0
    %1250 = vmatpush2.msra.mxu0 0.0
    %1251 = vmatprep.mubr.f32.mxu0 0.0
    %1252 = vmatmul.mubr.f32.gmra.mxu0 %v1185
    %v1253 = vpop.f32.mrf.mxu0
    %v1254 = vadd.f32 %v1180, %v1253
    %v1255 = vpop.f32.mrf.mxu0
    %1256 = vdwg.mxu0
    %vm1257 = vcmask 74752
    %1258 = vst.msk [vmem:[#allocation3] sm:$0x3] %vm1257, %v1254
    // Predicated region
    $region26: #{rnn_forward.1} parent=1 // pred_check
      _
    $region27: #{rnn_forward.1} parent=1 // pred_check_branch
      %1260 = sbr.rel (0) target = $region29
    $region28: #{rnn_forward.1} parent=1 // pred_region
      %s1262 = ssub.s32 32, 32
      %1263 = vsyncadd [#allocation4], %s1262
      %s1265 = sshll.u32 [#allocation3], 4
      %s1266 = int_to_ptr.vmem [resolvable:$true] %s1265
      %1268 = dma.vmem_to_hbm [thread:$0]  %s1266, 32, %s6, [#allocation4]
    $region29: #{rnn_forward.1} parent=1 // pred_fallthru
      _
    // Predicated region
    $region30: #{rnn_forward.1} parent=1 // pred_check
      _
    $region31: #{rnn_forward.1} parent=1 // pred_check_branch
      %1270 = sbr.rel (0) target = $region33
    $region32: #{rnn_forward.1} parent=1 // pred_region
      %1271 = dma.done [#allocation4], 32
    $region33: #{rnn_forward.1} parent=1 // pred_fallthru
      _
    %1272 = vsyncpa [#allocation4], 1

</llo_original>
